<compile_context>
chip_gen: v6e
topology: v6e:2x2x1
jax: 0.10.0
libtpu: 0.0.40
codegen_flags: <defaults>
</compile_context>

<pallas_src>
import math
import functools

import jax
import jax.numpy as jnp
from jax.experimental import pallas as pl
from jax.experimental.pallas import tpu as pltpu


# ----------------------------------------------------------------------------
# ALiBi slopes (matches get_slopes in the PyTorch reference).  The full
# [H, S, S] mask of construct_alibi is NOT built; the bias slope*j + causal
# is generated inside the attention kernel (equivalent, since the reference
# mask is exactly causal[i,j] + slope_h * j).
# ----------------------------------------------------------------------------
def get_slopes(n):
    def pow2_slopes(n):
        start = 2 ** (-2 ** (-(math.log2(n) - 3)))
        ratio = start
        return [start * ratio ** i for i in range(n)]

    if math.log2(n).is_integer():
        return pow2_slopes(n)
    cp = 2 ** math.floor(math.log2(n))
    return pow2_slopes(cp) + get_slopes(2 * cp)[0::2][: n - cp]


# ----------------------------------------------------------------------------
# Tiling helper: largest multiple of `align` that divides `dim` and is <= target,
# otherwise the full dim (single block).
# ----------------------------------------------------------------------------
def _pick_tile(dim, target, align):
    if dim <= target:
        return dim
    t = (target // align) * align
    while t >= align:
        if dim % t == 0:
            return t
        t -= align
    return dim


_VMEM_LIMIT = 48 * 1024 * 1024  # explicit scoped-VMEM limit with headroom (fits v7x's 64 MiB)


# ----------------------------------------------------------------------------
# Kernels
# ----------------------------------------------------------------------------
def _matmul_kernel(x_ref, w_ref, b_ref, o_ref, acc_ref, *, act):
    """Tiled y = x @ W + b (+ optional GELU). bf16 MXU inputs, f32 accumulation."""
    k = pl.program_id(2)

    @pl.when(k == 0)
    def _():
        acc_ref[...] = jnp.zeros_like(acc_ref)

    acc_ref[...] += jnp.dot(x_ref[...], w_ref[...],
                            preferred_element_type=jnp.float32)

    @pl.when(k == pl.num_programs(2) - 1)
    def _():
        y = acc_ref[...] + b_ref[...].astype(jnp.float32)
        if act == "gelu":
            # TODO(synk): PyTorch F.gelu default is exact (erf-based); tanh approximation
            # used for TPU-safe transcendental lowering (rides the EUP slot).
            c = math.sqrt(2.0 / math.pi)
            y = 0.5 * y * (1.0 + jnp.tanh(c * (y + 0.044715 * y * y * y)))
        o_ref[...] = y.astype(o_ref.dtype)


def _matmul_res_ln_kernel(x_ref, w_ref, b_ref, res_ref, g_ref, beta_ref,
                          o_ref, acc_ref, *, eps):
    """Tiled y = LayerNorm((x @ W + b) + residual). LN epilogue fused at last K step."""
    k = pl.program_id(1)

    @pl.when(k == 0)
    def _():
        acc_ref[...] = jnp.zeros_like(acc_ref)

    acc_ref[...] += jnp.dot(x_ref[...], w_ref[...],
                            preferred_element_type=jnp.float32)

    @pl.when(k == pl.num_programs(1) - 1)
    def _():
        y = acc_ref[...] + b_ref[...].astype(jnp.float32) + res_ref[...].astype(jnp.float32)
        mu = jnp.mean(y, axis=-1, keepdims=True)
        var = jnp.mean(jnp.square(y - mu), axis=-1, keepdims=True)
        yn = (y - mu) * jax.lax.rsqrt(var + eps)
        o_ref[...] = (yn * g_ref[...].astype(jnp.float32)
                      + beta_ref[...].astype(jnp.float32)).astype(o_ref.dtype)


def _ln_kernel(x_ref, g_ref, b_ref, o_ref, *, eps):
    x = x_ref[...].astype(jnp.float32)
    mu = jnp.mean(x, axis=-1, keepdims=True)
    var = jnp.mean(jnp.square(x - mu), axis=-1, keepdims=True)
    o_ref[...] = ((x - mu) * jax.lax.rsqrt(var + eps) * g_ref[...].astype(jnp.float32)
                  + b_ref[...].astype(jnp.float32)).astype(o_ref.dtype)


def _flash_attn_kernel(slopes_ref,                    # scalar-prefetch: [H] f32 in SMEM
                       q_ref, kt_ref, v_ref, o_ref,   # q:[tq,Dh]  kT:[Dh,tk]  v:[tk,Dh]
                       m_scr, l_scr, acc_scr, *, scale, tq, tk):
    h = pl.program_id(1)
    qi = pl.program_id(2)
    ki = pl.program_id(3)

    @pl.when(ki == 0)
    def _():
        m_scr[...] = jnp.full_like(m_scr, -jnp.inf)
        l_scr[...] = jnp.zeros_like(l_scr)
        acc_scr[...] = jnp.zeros_like(acc_scr)

    # Skip KV tiles entirely in the causal future of this Q tile.
    @pl.when(ki * tk <= qi * tq + (tq - 1))
    def _():
        s = jnp.dot(q_ref[...], kt_ref[...],
                    preferred_element_type=jnp.float32) * scale          # [tq, tk]

        # ALiBi + causal bias computed in-kernel (no [H,S,S] mask DMA).
        rows = qi * tq + jax.lax.broadcasted_iota(jnp.int32, (tq, tk), 0)
        cols = ki * tk + jax.lax.broadcasted_iota(jnp.int32, (tq, tk), 1)
        slope = slopes_ref[h]
        s = s + slope * cols.astype(jnp.float32)   # absolute-column ALiBi (matches reference)
        s = jnp.where(cols <= rows, s, -jnp.inf)   # causal mask

        m_prev = m_scr[...]
        m_new = jnp.maximum(m_prev, jnp.max(s, axis=-1, keepdims=True))
        alpha = jnp.exp(m_prev - m_new)
        p = jnp.exp(s - m_new)
        l_scr[...] = alpha * l_scr[...] + jnp.sum(p, axis=-1, keepdims=True)
        acc_scr[...] = alpha * acc_scr[...] + jnp.dot(
            p.astype(v_ref.dtype), v_ref[...], preferred_element_type=jnp.float32)
        m_scr[...] = m_new

    @pl.when(ki == pl.num_programs(3) - 1)
    def _():
        inv_l = pl.reciprocal(l_scr[...], approx=True)
        o_ref[...] = (acc_scr[...] * inv_l).astype(o_ref.dtype)


# ----------------------------------------------------------------------------
# pallas_call wrappers
# ----------------------------------------------------------------------------
def linear(x, w, b, act=None, out_dtype=jnp.bfloat16, tm=256, tn=512, tk=512):
    M, K = x.shape
    N = w.shape[1]
    tm = _pick_tile(M, tm, 8)
    tn = _pick_tile(N, tn, 128)
    tk = _pick_tile(K, tk, 128)
    return pl.pallas_call(
        functools.partial(_matmul_kernel, act=act),
        out_shape=jax.ShapeDtypeStruct((M, N), out_dtype),
        grid=(M // tm, N // tn, K // tk),
        in_specs=[
            pl.BlockSpec((tm, tk), lambda i, j, k: (i, k)),
            pl.BlockSpec((tk, tn), lambda i, j, k: (k, j)),
            pl.BlockSpec((1, tn), lambda i, j, k: (0, j)),
        ],
        out_specs=pl.BlockSpec((tm, tn), lambda i, j, k: (i, j)),
        scratch_shapes=[pltpu.VMEM((tm, tn), jnp.float32)],
        compiler_params=pltpu.CompilerParams(
            dimension_semantics=("parallel", "parallel", "arbitrary"),
            vmem_limit_bytes=_VMEM_LIMIT),
    )(x, w, b)


def linear_residual_layernorm(x, w, b, res, g, beta, eps=1e-5,
                              out_dtype=jnp.bfloat16, tm=256, tk=512):
    """y = LayerNorm(x @ W + b + res); output width N (= d_model) is kept as one block."""
    M, K = x.shape
    N = w.shape[1]
    tm = _pick_tile(M, tm, 8)
    tk = _pick_tile(K, tk, 128)
    return pl.pallas_call(
        functools.partial(_matmul_res_ln_kernel, eps=eps),
        out_shape=jax.ShapeDtypeStruct((M, N), out_dtype),
        grid=(M // tm, K // tk),
        in_specs=[
            pl.BlockSpec((tm, tk), lambda i, k: (i, k)),
            pl.BlockSpec((tk, N), lambda i, k: (k, 0)),
            pl.BlockSpec((1, N), lambda i, k: (0, 0)),
            pl.BlockSpec((tm, N), lambda i, k: (i, 0)),
            pl.BlockSpec((1, N), lambda i, k: (0, 0)),
            pl.BlockSpec((1, N), lambda i, k: (0, 0)),
        ],
        out_specs=pl.BlockSpec((tm, N), lambda i, k: (i, 0)),
        scratch_shapes=[pltpu.VMEM((tm, N), jnp.float32)],
        compiler_params=pltpu.CompilerParams(
            dimension_semantics=("parallel", "arbitrary"),
            vmem_limit_bytes=_VMEM_LIMIT),
    )(x, w, b, res, g, beta)


def layernorm(x, g, b, eps=1e-5, out_dtype=jnp.bfloat16, tm=1024):
    M, D = x.shape
    tm = _pick_tile(M, tm, 8)
    return pl.pallas_call(
        functools.partial(_ln_kernel, eps=eps),
        out_shape=jax.ShapeDtypeStruct((M, D), out_dtype),
        grid=(M // tm,),
        in_specs=[
            pl.BlockSpec((tm, D), lambda i: (i, 0)),
            pl.BlockSpec((1, D), lambda i: (0, 0)),
            pl.BlockSpec((1, D), lambda i: (0, 0)),
        ],
        out_specs=pl.BlockSpec((tm, D), lambda i: (i, 0)),
        compiler_params=pltpu.CompilerParams(dimension_semantics=("parallel",)),
    )(x, g, b)


def flash_attention(q, k_t, v, slopes):
    """q,v: [B,H,S,Dh]; k_t: [B,H,Dh,S] (pre-transposed); slopes: [H] f32."""
    B, H, S, Dh = q.shape
    scale = 1.0 / math.sqrt(Dh)
    tq = _pick_tile(S, 256, 8)
    tk = _pick_tile(S, 256, 128)
    return pl.pallas_call(
        functools.partial(_flash_attn_kernel, scale=scale, tq=tq, tk=tk),
        out_shape=jax.ShapeDtypeStruct((B, H, S, Dh), q.dtype),
        grid_spec=pltpu.PrefetchScalarGridSpec(
            num_scalar_prefetch=1,
            grid=(B, H, S // tq, S // tk),
            in_specs=[
                pl.BlockSpec((None, None, tq, Dh), lambda b, h, qi, ki, sl: (b, h, qi, 0)),
                pl.BlockSpec((None, None, Dh, tk), lambda b, h, qi, ki, sl: (b, h, 0, ki)),
                pl.BlockSpec((None, None, tk, Dh), lambda b, h, qi, ki, sl: (b, h, ki, 0)),
            ],
            out_specs=pl.BlockSpec((None, None, tq, Dh),
                                   lambda b, h, qi, ki, sl: (b, h, qi, 0)),
            scratch_shapes=[
                pltpu.VMEM((tq, 1), jnp.float32),   # running max m_i
                pltpu.VMEM((tq, 1), jnp.float32),   # running sum l_i
                pltpu.VMEM((tq, Dh), jnp.float32),  # output accumulator
            ],
        ),
        compiler_params=pltpu.CompilerParams(
            dimension_semantics=("parallel", "parallel", "parallel", "arbitrary"),
            vmem_limit_bytes=_VMEM_LIMIT),
    )(slopes, q, k_t, v)


# ----------------------------------------------------------------------------
# Model: parameters + forward
# ----------------------------------------------------------------------------
def init_params(key, vocab, d, n_layers, heads, ffn):
    keys = jax.random.split(key, 2 + n_layers)

    def w(k, shape, scale=0.02):
        # weights stored [in, out] in bf16 (MXU-native); biases / LN params in f32
        return (scale * jax.random.normal(k, shape, dtype=jnp.float32)).astype(jnp.bfloat16)

    params = {
        "embed": w(keys[0], (vocab, d)),
        "norm_g": jnp.ones((1, d), jnp.float32),
        "norm_b": jnp.zeros((1, d), jnp.float32),
        "proj_w": w(keys[1], (d, vocab)),
        "proj_b": jnp.zeros((1, vocab), jnp.float32),
        "layers": [],
    }
    for i in range(n_layers):
        lk = jax.random.split(keys[2 + i], 4)
        params["layers"].append({
            "c_attn_w": w(lk[0], (d, 3 * d)),
            "c_attn_b": jnp.zeros((1, 3 * d), jnp.float32),
            "c_proj_w": w(lk[1], (d, d)),
            "c_proj_b": jnp.zeros((1, d), jnp.float32),
            "l1_w": w(lk[2], (d, ffn)),
            "l1_b": jnp.zeros((1, ffn), jnp.float32),
            "l2_w": w(lk[3], (ffn, d)),
            "l2_b": jnp.zeros((1, d), jnp.float32),
            "ln1_g": jnp.ones((1, d), jnp.float32),
            "ln1_b": jnp.zeros((1, d), jnp.float32),
            "ln2_g": jnp.ones((1, d), jnp.float32),
            "ln2_b": jnp.zeros((1, d), jnp.float32),
        })
    return params


def decoder_block(x, slopes, p, B, S, H):
    D = x.shape[1]
    Dh = D // H

    # SimpleAttention: fused QKV projection, then flash attention per (batch, head)
    qkv = linear(x, p["c_attn_w"], p["c_attn_b"])            # [B*S, 3D] bf16
    qkv = qkv.reshape(B, S, 3, H, Dh)
    q = qkv[:, :, 0].transpose(0, 2, 1, 3)                   # [B, H, S, Dh]
    k_t = qkv[:, :, 1].transpose(0, 2, 3, 1)                  # [B, H, Dh, S]  (K pre-transposed)
    v = qkv[:, :, 2].transpose(0, 2, 1, 3)                   # [B, H, S, Dh]

    a = flash_attention(q, k_t, v, slopes)                    # [B, H, S, Dh]
    a = a.transpose(0, 2, 1, 3).reshape(B * S, D)             # combine heads (XLA glue)

    # c_proj + residual + LayerNorm fused into one tiled kernel (dropout = identity)
    x = linear_residual_layernorm(a, p["c_proj_w"], p["c_proj_b"], x, p["ln1_g"], p["ln1_b"])

    # feed-forward: linear1+GELU, then linear2 + residual + LayerNorm fused
    h1 = linear(x, p["l1_w"], p["l1_b"], act="gelu")
    x = linear_residual_layernorm(h1, p["l2_w"], p["l2_b"], x, p["ln2_g"], p["ln2_b"])
    return x


def alibi_transformer_forward(params, tokens, slopes, heads):
    B, S = tokens.shape
    D = params["embed"].shape[1]
    # TODO(synk): embedding gather stays as plain-JAX glue (no clean Pallas gather here).
    x = params["embed"][tokens].reshape(B * S, D)             # [B*S, D] bf16
    for lp in params["layers"]:
        x = decoder_block(x, slopes, lp, B, S, heads)
    x = layernorm(x, params["norm_g"], params["norm_b"])
    logits = linear(x, params["proj_w"], params["proj_b"], out_dtype=jnp.float32)
    return logits.reshape(B, S, -1)


if __name__ == "__main__":
    # small, module-consistent shapes
    VOCAB, EMBED_DIM, N_LAYERS, N_HEADS = 64, 64, 2, 4
    PROJ_FWD = 128
    B, S = 2, 8

    key = jax.random.PRNGKey(0)
    k_tok, k_par = jax.random.split(key)
    tokens = jax.random.randint(k_tok, (B, S), 0, VOCAB, dtype=jnp.int32)
    params = init_params(k_par, VOCAB, EMBED_DIM, N_LAYERS, N_HEADS, PROJ_FWD)
    slopes = jnp.asarray(get_slopes(N_HEADS), dtype=jnp.float32)   # [H]

    fwd = jax.jit(functools.partial(alibi_transformer_forward, heads=N_HEADS))
    logits = fwd(params, tokens, slopes)
    logits = jax.block_until_ready(logits)
    assert logits.shape == (B, S, VOCAB)
    assert bool(jnp.all(jnp.isfinite(logits)))
    print("KERNEL_OK")
</pallas_src>

<mosaic_0001>
module attributes {stable_mosaic.version = 11 : i64} {
  func.func @_matmul_kernel(%arg0: i32, %arg1: i32, %arg2: i32, %arg3: memref<16x64xbf16, #tpu.memory_space<vmem>>, %arg4: memref<64x192xbf16, #tpu.memory_space<vmem>>, %arg5: memref<1x192xf32, #tpu.memory_space<vmem>>, %arg6: memref<16x192xbf16, #tpu.memory_space<vmem>>, %arg7: memref<16x192xf32, #tpu.memory_space<vmem>>) attributes {dimension_semantics = [#tpu.dimension_semantics<parallel>, #tpu.dimension_semantics<parallel>, #tpu.dimension_semantics<arbitrary>], iteration_bounds = array<i64: 1, 1, 1>, scalar_prefetch = 0 : i64, scratch_operands = 1 : i64, tpu.core_type = #tpu.core_type<tc>, window_params = [{transform_indices = @transform_0, window_bounds = array<i64: 16, 64>}, {transform_indices = @transform_1, window_bounds = array<i64: 64, 192>}, {transform_indices = @transform_2, window_bounds = array<i64: 1, 192>}, {transform_indices = @transform_3, window_bounds = array<i64: 16, 192>}]} {
    %c0_i32 = arith.constant 0 : i32
    %0 = arith.cmpi eq, %arg2, %c0_i32 : i32
    %1 = arith.extui %0 : i1 to i32
    %c0_i32_0 = arith.constant 0 : i32
    %2 = arith.cmpi ne, %1, %c0_i32_0 : i32
    scf.if %2 {
      %cst_10 = arith.constant 0.000000e+00 : f32
      %12 = vector.broadcast %cst_10 : f32 to vector<16x192xf32>
      %c0_11 = arith.constant 0 : index
      %c0_12 = arith.constant 0 : index
      %13 = vector.load %arg7[%c0_11, %c0_12] : memref<16x192xf32, #tpu.memory_space<vmem>>, vector<16x192xf32>
      tpu.vector_store %arg7[%c0_11, %c0_12], %12 {strides = array<i32>} : memref<16x192xf32, #tpu.memory_space<vmem>>, vector<16x192xf32>,
    } else {
    }
    %c0 = arith.constant 0 : index
    %c0_1 = arith.constant 0 : index
    %3 = vector.load %arg7[%c0, %c0_1] : memref<16x192xf32, #tpu.memory_space<vmem>>, vector<16x192xf32>
    %c0_2 = arith.constant 0 : index
    %c0_3 = arith.constant 0 : index
    %4 = vector.load %arg3[%c0_2, %c0_3] : memref<16x64xbf16, #tpu.memory_space<vmem>>, vector<16x64xbf16>
    %c0_4 = arith.constant 0 : index
    %c0_5 = arith.constant 0 : index
    %5 = vector.load %arg4[%c0_4, %c0_5] : memref<64x192xbf16, #tpu.memory_space<vmem>>, vector<64x192xbf16>
    %cst = arith.constant dense<0.000000e+00> : vector<16x192xf32>
    %6 = tpu.matmul %4, %5, %cst {dimension_numbers = #tpu.dot_dimension_numbers<[1], [0], [0], [1], [0, 0, 1, 1], [], []>} : vector<16x64xbf16>, vector<64x192xbf16>, vector<16x192xf32> -> vector<16x192xf32>
    %7 = arith.addf %3, %6 : vector<16x192xf32>
    %c0_6 = arith.constant 0 : index
    %c0_7 = arith.constant 0 : index
    %8 = vector.load %arg7[%c0_6, %c0_7] : memref<16x192xf32, #tpu.memory_space<vmem>>, vector<16x192xf32>
    tpu.vector_store %arg7[%c0_6, %c0_7], %7 {strides = array<i32>} : memref<16x192xf32, #tpu.memory_space<vmem>>, vector<16x192xf32>,
    %c0_i32_8 = arith.constant 0 : i32
    %9 = arith.cmpi eq, %arg2, %c0_i32_8 : i32
    %10 = arith.extui %9 : i1 to i32
    %c0_i32_9 = arith.constant 0 : i32
    %11 = arith.cmpi ne, %10, %c0_i32_9 : i32
    scf.if %11 {
      %c0_10 = arith.constant 0 : index
      %c0_11 = arith.constant 0 : index
      %12 = vector.load %arg7[%c0_10, %c0_11] : memref<16x192xf32, #tpu.memory_space<vmem>>, vector<16x192xf32>
      %c0_12 = arith.constant 0 : index
      %c0_13 = arith.constant 0 : index
      %13 = vector.load %arg5[%c0_12, %c0_13] : memref<1x192xf32, #tpu.memory_space<vmem>>, vector<1x192xf32>
      %14 = vector.broadcast %13 : vector<1x192xf32> to vector<16x192xf32>
      %15 = arith.addf %12, %14 : vector<16x192xf32>
      %16 = arith.truncf %15 : vector<16x192xf32> to vector<16x192xbf16>
      %c0_14 = arith.constant 0 : index
      %c0_15 = arith.constant 0 : index
      %17 = vector.load %arg6[%c0_14, %c0_15] : memref<16x192xbf16, #tpu.memory_space<vmem>>, vector<16x192xbf16>
      tpu.vector_store %arg6[%c0_14, %c0_15], %16 {strides = array<i32>} : memref<16x192xbf16, #tpu.memory_space<vmem>>, vector<16x192xbf16>,
    } else {
    }
    return
  }
  func.func @transform_0(%arg0: i32, %arg1: i32, %arg2: i32) -> (i32, i32) {
    %c0_i32 = arith.constant 0 : i32
    return %arg0, %arg2 : i32, i32
  }
  func.func @transform_1(%arg0: i32, %arg1: i32, %arg2: i32) -> (i32, i32) {
    %c0_i32 = arith.constant 0 : i32
    return %arg2, %arg1 : i32, i32
  }
  func.func @transform_2(%arg0: i32, %arg1: i32, %arg2: i32) -> (i32, i32) {
    %c0_i32 = arith.constant 0 : i32
    %c0_i32_0 = arith.constant 0 : i32
    return %c0_i32, %arg1 : i32, i32
  }
  func.func @transform_3(%arg0: i32, %arg1: i32, %arg2: i32) -> (i32, i32) {
    %c0_i32 = arith.constant 0 : i32
    return %arg0, %arg1 : i32, i32
  }
}

module attributes {stable_mosaic.version = 11 : i64} {
  func.func @_flash_attn_kernel(%arg0: i32, %arg1: i32, %arg2: i32, %arg3: i32, %arg4: memref<4xf32, #tpu.memory_space<smem>>, %arg5: memref<1x1x8x16xbf16, #tpu.memory_space<vmem>>, %arg6: memref<1x1x16x8xbf16, #tpu.memory_space<vmem>>, %arg7: memref<1x1x8x16xbf16, #tpu.memory_space<vmem>>, %arg8: memref<1x1x8x16xbf16, #tpu.memory_space<vmem>>, %arg9: memref<8x1xf32, #tpu.memory_space<vmem>>, %arg10: memref<8x1xf32, #tpu.memory_space<vmem>>, %arg11: memref<8x16xf32, #tpu.memory_space<vmem>>) attributes {dimension_semantics = [#tpu.dimension_semantics<parallel>, #tpu.dimension_semantics<parallel>, #tpu.dimension_semantics<parallel>, #tpu.dimension_semantics<arbitrary>], iteration_bounds = array<i64: 2, 4, 1, 1>, scalar_prefetch = 1 : i64, scratch_operands = 3 : i64, tpu.core_type = #tpu.core_type<tc>, window_params = [{transform_indices = @transform_0, window_bounds = array<i64: 1, 1, 8, 16>}, {transform_indices = @transform_1, window_bounds = array<i64: 1, 1, 16, 8>}, {transform_indices = @transform_2, window_bounds = array<i64: 1, 1, 8, 16>}, {transform_indices = @transform_3, window_bounds = array<i64: 1, 1, 8, 16>}]} {
    %c0_i32 = arith.constant 0 : i32
    %0 = arith.cmpi eq, %arg3, %c0_i32 : i32
    %1 = arith.extui %0 : i1 to i32
    %c0_i32_0 = arith.constant 0 : i32
    %2 = arith.cmpi ne, %1, %c0_i32_0 : i32
    scf.if %2 {
      %cst = arith.constant 0xFF800000 : f32
      %12 = vector.broadcast %cst : f32 to vector<8x1xf32>
      %c0 = arith.constant 0 : index
      %c0_5 = arith.constant 0 : index
      %13 = vector.load %arg9[%c0, %c0_5] : memref<8x1xf32, #tpu.memory_space<vmem>>, vector<8x1xf32>
      tpu.vector_store %arg9[%c0, %c0_5], %12 {strides = array<i32>} : memref<8x1xf32, #tpu.memory_space<vmem>>, vector<8x1xf32>,
      %cst_6 = arith.constant 0.000000e+00 : f32
      %14 = vector.broadcast %cst_6 : f32 to vector<8x1xf32>
      %c0_7 = arith.constant 0 : index
      %c0_8 = arith.constant 0 : index
      %15 = vector.load %arg10[%c0_7, %c0_8] : memref<8x1xf32, #tpu.memory_space<vmem>>, vector<8x1xf32>
      tpu.vector_store %arg10[%c0_7, %c0_8], %14 {strides = array<i32>} : memref<8x1xf32, #tpu.memory_space<vmem>>, vector<8x1xf32>,
      %cst_9 = arith.constant 0.000000e+00 : f32
      %16 = vector.broadcast %cst_9 : f32 to vector<8x16xf32>
      %c0_10 = arith.constant 0 : index
      %c0_11 = arith.constant 0 : index
      %17 = vector.load %arg11[%c0_10, %c0_11] : memref<8x16xf32, #tpu.memory_space<vmem>>, vector<8x16xf32>
      tpu.vector_store %arg11[%c0_10, %c0_11], %16 {strides = array<i32>} : memref<8x16xf32, #tpu.memory_space<vmem>>, vector<8x16xf32>,
    } else {
    }
    %c8_i32 = arith.constant 8 : i32
    %3 = arith.muli %arg3, %c8_i32 : i32
    %c8_i32_1 = arith.constant 8 : i32
    %4 = arith.muli %arg2, %c8_i32_1 : i32
    %c7_i32 = arith.constant 7 : i32
    %5 = arith.addi %4, %c7_i32 : i32
    %6 = arith.cmpi sle, %3, %5 : i32
    %7 = arith.extui %6 : i1 to i32
    %c0_i32_2 = arith.constant 0 : i32
    %8 = arith.cmpi ne, %7, %c0_i32_2 : i32
    scf.if %8 {
      %c0 = arith.constant 0 : index
      %c0_5 = arith.constant 0 : index
      %c0_6 = arith.constant 0 : index
      %c0_7 = arith.constant 0 : index
      %12 = vector.load %arg5[%c0, %c0_5, %c0_6, %c0_7] : memref<1x1x8x16xbf16, #tpu.memory_space<vmem>>, vector<1x1x8x16xbf16>
      %13 = vector.shape_cast %12 : vector<1x1x8x16xbf16> to vector<8x16xbf16>
      %c0_8 = arith.constant 0 : index
      %c0_9 = arith.constant 0 : index
      %c0_10 = arith.constant 0 : index
      %c0_11 = arith.constant 0 : index
      %14 = vector.load %arg6[%c0_8, %c0_9, %c0_10, %c0_11] : memref<1x1x16x8xbf16, #tpu.memory_space<vmem>>, vector<1x1x16x8xbf16>
      %15 = vector.shape_cast %14 : vector<1x1x16x8xbf16> to vector<16x8xbf16>
      %cst = arith.constant dense<0.000000e+00> : vector<8x8xf32>
      %16 = tpu.matmul %13, %15, %cst {dimension_numbers = #tpu.dot_dimension_numbers<[1], [0], [0], [1], [0, 0, 1, 1], [], []>} : vector<8x16xbf16>, vector<16x8xbf16>, vector<8x8xf32> -> vector<8x8xf32>
      %cst_12 = arith.constant 2.500000e-01 : f32
      %17 = vector.broadcast %cst_12 : f32 to vector<8x8xf32>
      %18 = arith.mulf %16, %17 : vector<8x8xf32>
      %c8_i32_13 = arith.constant 8 : i32
      %19 = arith.muli %arg2, %c8_i32_13 : i32
      %20 = tpu.iota {dimensions = array<i32: 0>} : vector<8x8xi32>
      %21 = vector.broadcast %19 : i32 to vector<8x8xi32>
      %22 = arith.addi %21, %20 : vector<8x8xi32>
      %c8_i32_14 = arith.constant 8 : i32
      %23 = arith.muli %arg3, %c8_i32_14 : i32
      %24 = tpu.iota {dimensions = array<i32: 1>} : vector<8x8xi32>
      %25 = vector.broadcast %23 : i32 to vector<8x8xi32>
      %26 = arith.addi %25, %24 : vector<8x8xi32>
      %27 = arith.index_cast %arg1 : i32 to index
      %28 = memref.load %arg4[%27] : memref<4xf32, #tpu.memory_space<smem>>
      %29 = arith.sitofp %26 : vector<8x8xi32> to vector<8x8xf32>
      %30 = vector.broadcast %28 : f32 to vector<8x8xf32>
      %31 = arith.mulf %30, %29 : vector<8x8xf32>
      %32 = arith.addf %18, %31 : vector<8x8xf32>
      %33 = arith.cmpi sle, %26, %22 : vector<8x8xi32>
      %cst_15 = arith.constant 0xFF800000 : f32
      %34 = vector.broadcast %cst_15 : f32 to vector<8x8xf32>
      %35 = arith.select %33, %32, %34 : vector<8x8xi1>, vector<8x8xf32>
      %c0_16 = arith.constant 0 : index
      %c0_17 = arith.constant 0 : index
      %36 = vector.load %arg9[%c0_16, %c0_17] : memref<8x1xf32, #tpu.memory_space<vmem>>, vector<8x1xf32>
      %cst_18 = arith.constant dense<0xFF800000> : vector<8xf32>
      %37 = vector.multi_reduction <maximumf>, %35, %cst_18 [1] : vector<8x8xf32> to vector<8xf32>
      %38 = vector.shape_cast %37 : vector<8xf32> to vector<8x1xf32>
      %39 = arith.maximumf %36, %38 : vector<8x1xf32>
      %40 = arith.subf %36, %39 : vector<8x1xf32>
      %41 = math.exp %40 : vector<8x1xf32>
      %42 = vector.broadcast %39 : vector<8x1xf32> to vector<8x8xf32>
      %43 = arith.subf %35, %42 : vector<8x8xf32>
      %44 = math.exp %43 : vector<8x8xf32>
      %c0_19 = arith.constant 0 : index
      %c0_20 = arith.constant 0 : index
      %45 = vector.load %arg10[%c0_19, %c0_20] : memref<8x1xf32, #tpu.memory_space<vmem>>, vector<8x1xf32>
      %46 = arith.mulf %41, %45 : vector<8x1xf32>
      %cst_21 = arith.constant dense<0.000000e+00> : vector<8xf32>
      %47 = vector.multi_reduction <add>, %44, %cst_21 [1] : vector<8x8xf32> to vector<8xf32>
      %48 = vector.shape_cast %47 : vector<8xf32> to vector<8x1xf32>
      %49 = arith.addf %46, %48 : vector<8x1xf32>
      %c0_22 = arith.constant 0 : index
      %c0_23 = arith.constant 0 : index
      %50 = vector.load %arg10[%c0_22, %c0_23] : memref<8x1xf32, #tpu.memory_space<vmem>>, vector<8x1xf32>
      tpu.vector_store %arg10[%c0_22, %c0_23], %49 {strides = array<i32>} : memref<8x1xf32, #tpu.memory_space<vmem>>, vector<8x1xf32>,
      %c0_24 = arith.constant 0 : index
      %c0_25 = arith.constant 0 : index
      %51 = vector.load %arg11[%c0_24, %c0_25] : memref<8x16xf32, #tpu.memory_space<vmem>>, vector<8x16xf32>
      %52 = vector.broadcast %41 : vector<8x1xf32> to vector<8x16xf32>
      %53 = arith.mulf %52, %51 : vector<8x16xf32>
      %54 = arith.truncf %44 : vector<8x8xf32> to vector<8x8xbf16>
      %c0_26 = arith.constant 0 : index
      %c0_27 = arith.constant 0 : index
      %c0_28 = arith.constant 0 : index
      %c0_29 = arith.constant 0 : index
      %55 = vector.load %arg7[%c0_26, %c0_27, %c0_28, %c0_29] : memref<1x1x8x16xbf16, #tpu.memory_space<vmem>>, vector<1x1x8x16xbf16>
      %56 = vector.shape_cast %55 : vector<1x1x8x16xbf16> to vector<8x16xbf16>
      %cst_30 = arith.constant dense<0.000000e+00> : vector<8x16xf32>
      %57 = tpu.matmul %54, %56, %cst_30 {dimension_numbers = #tpu.dot_dimension_numbers<[1], [0], [0], [1], [0, 0, 1, 1], [], []>} : vector<8x8xbf16>, vector<8x16xbf16>, vector<8x16xf32> -> vector<8x16xf32>
      %58 = arith.addf %53, %57 : vector<8x16xf32>
      %c0_31 = arith.constant 0 : index
      %c0_32 = arith.constant 0 : index
      %59 = vector.load %arg11[%c0_31, %c0_32] : memref<8x16xf32, #tpu.memory_space<vmem>>, vector<8x16xf32>
      tpu.vector_store %arg11[%c0_31, %c0_32], %58 {strides = array<i32>} : memref<8x16xf32, #tpu.memory_space<vmem>>, vector<8x16xf32>,
      %c0_33 = arith.constant 0 : index
      %c0_34 = arith.constant 0 : index
      %60 = vector.load %arg9[%c0_33, %c0_34] : memref<8x1xf32, #tpu.memory_space<vmem>>, vector<8x1xf32>
      tpu.vector_store %arg9[%c0_33, %c0_34], %39 {strides = array<i32>} : memref<8x1xf32, #tpu.memory_space<vmem>>, vector<8x1xf32>,
    } else {
    }
    %c0_i32_3 = arith.constant 0 : i32
    %9 = arith.cmpi eq, %arg3, %c0_i32_3 : i32
    %10 = arith.extui %9 : i1 to i32
    %c0_i32_4 = arith.constant 0 : i32
    %11 = arith.cmpi ne, %10, %c0_i32_4 : i32
    scf.if %11 {
      %c0 = arith.constant 0 : index
      %c0_5 = arith.constant 0 : index
      %12 = vector.load %arg10[%c0, %c0_5] : memref<8x1xf32, #tpu.memory_space<vmem>>, vector<8x1xf32>
      %13 = tpu.reciprocal %12 {approx = true} : vector<8x1xf32> -> vector<8x1xf32>
      %c0_6 = arith.constant 0 : index
      %c0_7 = arith.constant 0 : index
      %14 = vector.load %arg11[%c0_6, %c0_7] : memref<8x16xf32, #tpu.memory_space<vmem>>, vector<8x16xf32>
      %15 = vector.broadcast %13 : vector<8x1xf32> to vector<8x16xf32>
      %16 = arith.mulf %14, %15 : vector<8x16xf32>
      %17 = arith.truncf %16 : vector<8x16xf32> to vector<8x16xbf16>
      %c0_8 = arith.constant 0 : index
      %c0_9 = arith.constant 0 : index
      %c0_10 = arith.constant 0 : index
      %c0_11 = arith.constant 0 : index
      %18 = vector.load %arg8[%c0_8, %c0_9, %c0_10, %c0_11] : memref<1x1x8x16xbf16, #tpu.memory_space<vmem>>, vector<1x1x8x16xbf16>
      %19 = vector.shape_cast %18 : vector<1x1x8x16xbf16> to vector<8x16xbf16>
      %20 = vector.shape_cast %17 : vector<8x16xbf16> to vector<1x1x8x16xbf16>
      tpu.vector_store %arg8[%c0_8, %c0_9, %c0_10, %c0_11], %20 {strides = array<i32>} : memref<1x1x8x16xbf16, #tpu.memory_space<vmem>>, vector<1x1x8x16xbf16>,
    } else {
    }
    return
  }
  func.func @transform_0(%arg0: i32, %arg1: i32, %arg2: i32, %arg3: i32, %arg4: memref<4xf32, #tpu.memory_space<smem>>) -> (i32, i32, i32, i32) {
    %c0_i32 = arith.constant 0 : i32
    %c0_i32_0 = arith.constant 0 : i32
    return %arg0, %arg1, %arg2, %c0_i32 : i32, i32, i32, i32
  }
  func.func @transform_1(%arg0: i32, %arg1: i32, %arg2: i32, %arg3: i32, %arg4: memref<4xf32, #tpu.memory_space<smem>>) -> (i32, i32, i32, i32) {
    %c0_i32 = arith.constant 0 : i32
    %c0_i32_0 = arith.constant 0 : i32
    return %arg0, %arg1, %c0_i32, %arg3 : i32, i32, i32, i32
  }
  func.func @transform_2(%arg0: i32, %arg1: i32, %arg2: i32, %arg3: i32, %arg4: memref<4xf32, #tpu.memory_space<smem>>) -> (i32, i32, i32, i32) {
    %c0_i32 = arith.constant 0 : i32
    %c0_i32_0 = arith.constant 0 : i32
    return %arg0, %arg1, %arg3, %c0_i32 : i32, i32, i32, i32
  }
  func.func @transform_3(%arg0: i32, %arg1: i32, %arg2: i32, %arg3: i32, %arg4: memref<4xf32, #tpu.memory_space<smem>>) -> (i32, i32, i32, i32) {
    %c0_i32 = arith.constant 0 : i32
    %c0_i32_0 = arith.constant 0 : i32
    return %arg0, %arg1, %arg2, %c0_i32 : i32, i32, i32, i32
  }
}

module attributes {stable_mosaic.version = 11 : i64} {
  func.func @_matmul_res_ln_kernel(%arg0: i32, %arg1: i32, %arg2: memref<16x64xbf16, #tpu.memory_space<vmem>>, %arg3: memref<64x64xbf16, #tpu.memory_space<vmem>>, %arg4: memref<1x64xf32, #tpu.memory_space<vmem>>, %arg5: memref<16x64xbf16, #tpu.memory_space<vmem>>, %arg6: memref<1x64xf32, #tpu.memory_space<vmem>>, %arg7: memref<1x64xf32, #tpu.memory_space<vmem>>, %arg8: memref<16x64xbf16, #tpu.memory_space<vmem>>, %arg9: memref<16x64xf32, #tpu.memory_space<vmem>>) attributes {dimension_semantics = [#tpu.dimension_semantics<parallel>, #tpu.dimension_semantics<arbitrary>], iteration_bounds = array<i64: 1, 1>, scalar_prefetch = 0 : i64, scratch_operands = 1 : i64, tpu.core_type = #tpu.core_type<tc>, window_params = [{transform_indices = @transform_0, window_bounds = array<i64: 16, 64>}, {transform_indices = @transform_1, window_bounds = array<i64: 64, 64>}, {pipeline_mode = #tpu.pipeline_mode<synchronous>, transform_indices = @transform_2, window_bounds = array<i64: 1, 64>}, {transform_indices = @transform_3, window_bounds = array<i64: 16, 64>}, {pipeline_mode = #tpu.pipeline_mode<synchronous>, transform_indices = @transform_4, window_bounds = array<i64: 1, 64>}, {pipeline_mode = #tpu.pipeline_mode<synchronous>, transform_indices = @transform_5, window_bounds = array<i64: 1, 64>}, {transform_indices = @transform_6, window_bounds = array<i64: 16, 64>}]} {
    %c0_i32 = arith.constant 0 : i32
    %0 = arith.cmpi eq, %arg1, %c0_i32 : i32
    %1 = arith.extui %0 : i1 to i32
    %c0_i32_0 = arith.constant 0 : i32
    %2 = arith.cmpi ne, %1, %c0_i32_0 : i32
    scf.if %2 {
      %cst_10 = arith.constant 0.000000e+00 : f32
      %12 = vector.broadcast %cst_10 : f32 to vector<16x64xf32>
      %c0_11 = arith.constant 0 : index
      %c0_12 = arith.constant 0 : index
      %13 = vector.load %arg9[%c0_11, %c0_12] : memref<16x64xf32, #tpu.memory_space<vmem>>, vector<16x64xf32>
      tpu.vector_store %arg9[%c0_11, %c0_12], %12 {strides = array<i32>} : memref<16x64xf32, #tpu.memory_space<vmem>>, vector<16x64xf32>,
    } else {
    }
    %c0 = arith.constant 0 : index
    %c0_1 = arith.constant 0 : index
    %3 = vector.load %arg9[%c0, %c0_1] : memref<16x64xf32, #tpu.memory_space<vmem>>, vector<16x64xf32>
    %c0_2 = arith.constant 0 : index
    %c0_3 = arith.constant 0 : index
    %4 = vector.load %arg2[%c0_2, %c0_3] : memref<16x64xbf16, #tpu.memory_space<vmem>>, vector<16x64xbf16>
    %c0_4 = arith.constant 0 : index
    %c0_5 = arith.constant 0 : index
    %5 = vector.load %arg3[%c0_4, %c0_5] : memref<64x64xbf16, #tpu.memory_space<vmem>>, vector<64x64xbf16>
    %cst = arith.constant dense<0.000000e+00> : vector<16x64xf32>
    %6 = tpu.matmul %4, %5, %cst {dimension_numbers = #tpu.dot_dimension_numbers<[1], [0], [0], [1], [0, 0, 1, 1], [], []>} : vector<16x64xbf16>, vector<64x64xbf16>, vector<16x64xf32> -> vector<16x64xf32>
    %7 = arith.addf %3, %6 : vector<16x64xf32>
    %c0_6 = arith.constant 0 : index
    %c0_7 = arith.constant 0 : index
    %8 = vector.load %arg9[%c0_6, %c0_7] : memref<16x64xf32, #tpu.memory_space<vmem>>, vector<16x64xf32>
    tpu.vector_store %arg9[%c0_6, %c0_7], %7 {strides = array<i32>} : memref<16x64xf32, #tpu.memory_space<vmem>>, vector<16x64xf32>,
    %c0_i32_8 = arith.constant 0 : i32
    %9 = arith.cmpi eq, %arg1, %c0_i32_8 : i32
    %10 = arith.extui %9 : i1 to i32
    %c0_i32_9 = arith.constant 0 : i32
    %11 = arith.cmpi ne, %10, %c0_i32_9 : i32
    scf.if %11 {
      %c0_10 = arith.constant 0 : index
      %c0_11 = arith.constant 0 : index
      %12 = vector.load %arg9[%c0_10, %c0_11] : memref<16x64xf32, #tpu.memory_space<vmem>>, vector<16x64xf32>
      %c0_12 = arith.constant 0 : index
      %c0_13 = arith.constant 0 : index
      %13 = vector.load %arg4[%c0_12, %c0_13] : memref<1x64xf32, #tpu.memory_space<vmem>>, vector<1x64xf32>
      %14 = vector.broadcast %13 : vector<1x64xf32> to vector<16x64xf32>
      %15 = arith.addf %12, %14 : vector<16x64xf32>
      %c0_14 = arith.constant 0 : index
      %c0_15 = arith.constant 0 : index
      %16 = vector.load %arg5[%c0_14, %c0_15] : memref<16x64xbf16, #tpu.memory_space<vmem>>, vector<16x64xbf16>
      %17 = arith.extf %16 : vector<16x64xbf16> to vector<16x64xf32>
      %18 = arith.addf %15, %17 : vector<16x64xf32>
      %cst_16 = arith.constant dense<0.000000e+00> : vector<16xf32>
      %19 = vector.multi_reduction <add>, %18, %cst_16 [1] : vector<16x64xf32> to vector<16xf32>
      %20 = vector.shape_cast %19 : vector<16xf32> to vector<16x1xf32>
      %cst_17 = arith.constant 6.400000e+01 : f32
      %21 = vector.broadcast %cst_17 : f32 to vector<16x1xf32>
      %22 = arith.divf %20, %21 : vector<16x1xf32>
      %23 = vector.broadcast %22 : vector<16x1xf32> to vector<16x64xf32>
      %24 = arith.subf %18, %23 : vector<16x64xf32>
      %25 = arith.mulf %24, %24 : vector<16x64xf32>
      %cst_18 = arith.constant dense<0.000000e+00> : vector<16xf32>
      %26 = vector.multi_reduction <add>, %25, %cst_18 [1] : vector<16x64xf32> to vector<16xf32>
      %27 = vector.shape_cast %26 : vector<16xf32> to vector<16x1xf32>
      %cst_19 = arith.constant 6.400000e+01 : f32
      %28 = vector.broadcast %cst_19 : f32 to vector<16x1xf32>
      %29 = arith.divf %27, %28 : vector<16x1xf32>
      %30 = vector.broadcast %22 : vector<16x1xf32> to vector<16x64xf32>
      %31 = arith.subf %18, %30 : vector<16x64xf32>
      %cst_20 = arith.constant 9.99999974E-6 : f32
      %32 = vector.broadcast %cst_20 : f32 to vector<16x1xf32>
      %33 = arith.addf %29, %32 : vector<16x1xf32>
      %34 = math.rsqrt %33 : vector<16x1xf32>
      %35 = vector.broadcast %34 : vector<16x1xf32> to vector<16x64xf32>
      %36 = arith.mulf %31, %35 : vector<16x64xf32>
      %c0_21 = arith.constant 0 : index
      %c0_22 = arith.constant 0 : index
      %37 = vector.load %arg6[%c0_21, %c0_22] : memref<1x64xf32, #tpu.memory_space<vmem>>, vector<1x64xf32>
      %38 = vector.broadcast %37 : vector<1x64xf32> to vector<16x64xf32>
      %39 = arith.mulf %36, %38 : vector<16x64xf32>
      %c0_23 = arith.constant 0 : index
      %c0_24 = arith.constant 0 : index
      %40 = vector.load %arg7[%c0_23, %c0_24] : memref<1x64xf32, #tpu.memory_space<vmem>>, vector<1x64xf32>
      %41 = vector.broadcast %40 : vector<1x64xf32> to vector<16x64xf32>
      %42 = arith.addf %39, %41 : vector<16x64xf32>
      %43 = arith.truncf %42 : vector<16x64xf32> to vector<16x64xbf16>
      %c0_25 = arith.constant 0 : index
      %c0_26 = arith.constant 0 : index
      %44 = vector.load %arg8[%c0_25, %c0_26] : memref<16x64xbf16, #tpu.memory_space<vmem>>, vector<16x64xbf16>
      tpu.vector_store %arg8[%c0_25, %c0_26], %43 {strides = array<i32>} : memref<16x64xbf16, #tpu.memory_space<vmem>>, vector<16x64xbf16>,
    } else {
    }
    return
  }
  func.func @transform_0(%arg0: i32, %arg1: i32) -> (i32, i32) {
    %c0_i32 = arith.constant 0 : i32
    return %arg0, %arg1 : i32, i32
  }
  func.func @transform_1(%arg0: i32, %arg1: i32) -> (i32, i32) {
    %c0_i32 = arith.constant 0 : i32
    %c0_i32_0 = arith.constant 0 : i32
    return %arg1, %c0_i32 : i32, i32
  }
  func.func @transform_2(%arg0: i32, %arg1: i32) -> (i32, i32) {
    %c0_i32 = arith.constant 0 : i32
    %c0_i32_0 = arith.constant 0 : i32
    %c0_i32_1 = arith.constant 0 : i32
    return %c0_i32, %c0_i32_0 : i32, i32
  }
  func.func @transform_3(%arg0: i32, %arg1: i32) -> (i32, i32) {
    %c0_i32 = arith.constant 0 : i32
    %c0_i32_0 = arith.constant 0 : i32
    return %arg0, %c0_i32 : i32, i32
  }
  func.func @transform_4(%arg0: i32, %arg1: i32) -> (i32, i32) {
    %c0_i32 = arith.constant 0 : i32
    %c0_i32_0 = arith.constant 0 : i32
    %c0_i32_1 = arith.constant 0 : i32
    return %c0_i32, %c0_i32_0 : i32, i32
  }
  func.func @transform_5(%arg0: i32, %arg1: i32) -> (i32, i32) {
    %c0_i32 = arith.constant 0 : i32
    %c0_i32_0 = arith.constant 0 : i32
    %c0_i32_1 = arith.constant 0 : i32
    return %c0_i32, %c0_i32_0 : i32, i32
  }
  func.func @transform_6(%arg0: i32, %arg1: i32) -> (i32, i32) {
    %c0_i32 = arith.constant 0 : i32
    %c0_i32_0 = arith.constant 0 : i32
    return %arg0, %c0_i32 : i32, i32
  }
}

module attributes {stable_mosaic.version = 11 : i64} {
  func.func @_matmul_kernel(%arg0: i32, %arg1: i32, %arg2: i32, %arg3: memref<16x64xbf16, #tpu.memory_space<vmem>>, %arg4: memref<64x128xbf16, #tpu.memory_space<vmem>>, %arg5: memref<1x128xf32, #tpu.memory_space<vmem>>, %arg6: memref<16x128xbf16, #tpu.memory_space<vmem>>, %arg7: memref<16x128xf32, #tpu.memory_space<vmem>>) attributes {dimension_semantics = [#tpu.dimension_semantics<parallel>, #tpu.dimension_semantics<parallel>, #tpu.dimension_semantics<arbitrary>], iteration_bounds = array<i64: 1, 1, 1>, scalar_prefetch = 0 : i64, scratch_operands = 1 : i64, tpu.core_type = #tpu.core_type<tc>, window_params = [{transform_indices = @transform_0, window_bounds = array<i64: 16, 64>}, {transform_indices = @transform_1, window_bounds = array<i64: 64, 128>}, {transform_indices = @transform_2, window_bounds = array<i64: 1, 128>}, {transform_indices = @transform_3, window_bounds = array<i64: 16, 128>}]} {
    %c0_i32 = arith.constant 0 : i32
    %0 = arith.cmpi eq, %arg2, %c0_i32 : i32
    %1 = arith.extui %0 : i1 to i32
    %c0_i32_0 = arith.constant 0 : i32
    %2 = arith.cmpi ne, %1, %c0_i32_0 : i32
    scf.if %2 {
      %cst_10 = arith.constant 0.000000e+00 : f32
      %12 = vector.broadcast %cst_10 : f32 to vector<16x128xf32>
      %c0_11 = arith.constant 0 : index
      %c0_12 = arith.constant 0 : index
      %13 = vector.load %arg7[%c0_11, %c0_12] : memref<16x128xf32, #tpu.memory_space<vmem>>, vector<16x128xf32>
      tpu.vector_store %arg7[%c0_11, %c0_12], %12 {strides = array<i32>} : memref<16x128xf32, #tpu.memory_space<vmem>>, vector<16x128xf32>,
    } else {
    }
    %c0 = arith.constant 0 : index
    %c0_1 = arith.constant 0 : index
    %3 = vector.load %arg7[%c0, %c0_1] : memref<16x128xf32, #tpu.memory_space<vmem>>, vector<16x128xf32>
    %c0_2 = arith.constant 0 : index
    %c0_3 = arith.constant 0 : index
    %4 = vector.load %arg3[%c0_2, %c0_3] : memref<16x64xbf16, #tpu.memory_space<vmem>>, vector<16x64xbf16>
    %c0_4 = arith.constant 0 : index
    %c0_5 = arith.constant 0 : index
    %5 = vector.load %arg4[%c0_4, %c0_5] : memref<64x128xbf16, #tpu.memory_space<vmem>>, vector<64x128xbf16>
    %cst = arith.constant dense<0.000000e+00> : vector<16x128xf32>
    %6 = tpu.matmul %4, %5, %cst {dimension_numbers = #tpu.dot_dimension_numbers<[1], [0], [0], [1], [0, 0, 1, 1], [], []>} : vector<16x64xbf16>, vector<64x128xbf16>, vector<16x128xf32> -> vector<16x128xf32>
    %7 = arith.addf %3, %6 : vector<16x128xf32>
    %c0_6 = arith.constant 0 : index
    %c0_7 = arith.constant 0 : index
    %8 = vector.load %arg7[%c0_6, %c0_7] : memref<16x128xf32, #tpu.memory_space<vmem>>, vector<16x128xf32>
    tpu.vector_store %arg7[%c0_6, %c0_7], %7 {strides = array<i32>} : memref<16x128xf32, #tpu.memory_space<vmem>>, vector<16x128xf32>,
    %c0_i32_8 = arith.constant 0 : i32
    %9 = arith.cmpi eq, %arg2, %c0_i32_8 : i32
    %10 = arith.extui %9 : i1 to i32
    %c0_i32_9 = arith.constant 0 : i32
    %11 = arith.cmpi ne, %10, %c0_i32_9 : i32
    scf.if %11 {
      %c0_10 = arith.constant 0 : index
      %c0_11 = arith.constant 0 : index
      %12 = vector.load %arg7[%c0_10, %c0_11] : memref<16x128xf32, #tpu.memory_space<vmem>>, vector<16x128xf32>
      %c0_12 = arith.constant 0 : index
      %c0_13 = arith.constant 0 : index
      %13 = vector.load %arg5[%c0_12, %c0_13] : memref<1x128xf32, #tpu.memory_space<vmem>>, vector<1x128xf32>
      %14 = vector.broadcast %13 : vector<1x128xf32> to vector<16x128xf32>
      %15 = arith.addf %12, %14 : vector<16x128xf32>
      %cst_14 = arith.constant 5.000000e-01 : f32
      %16 = vector.broadcast %cst_14 : f32 to vector<16x128xf32>
      %17 = arith.mulf %16, %15 : vector<16x128xf32>
      %cst_15 = arith.constant 4.471500e-02 : f32
      %18 = vector.broadcast %cst_15 : f32 to vector<16x128xf32>
      %19 = arith.mulf %18, %15 : vector<16x128xf32>
      %20 = arith.mulf %19, %15 : vector<16x128xf32>
      %21 = arith.mulf %20, %15 : vector<16x128xf32>
      %22 = arith.addf %15, %21 : vector<16x128xf32>
      %cst_16 = arith.constant 0.797884583 : f32
      %23 = vector.broadcast %cst_16 : f32 to vector<16x128xf32>
      %24 = arith.mulf %23, %22 : vector<16x128xf32>
      %25 = math.tanh %24 : vector<16x128xf32>
      %cst_17 = arith.constant 1.000000e+00 : f32
      %26 = vector.broadcast %cst_17 : f32 to vector<16x128xf32>
      %27 = arith.addf %26, %25 : vector<16x128xf32>
      %28 = arith.mulf %17, %27 : vector<16x128xf32>
      %29 = arith.truncf %28 : vector<16x128xf32> to vector<16x128xbf16>
      %c0_18 = arith.constant 0 : index
      %c0_19 = arith.constant 0 : index
      %30 = vector.load %arg6[%c0_18, %c0_19] : memref<16x128xbf16, #tpu.memory_space<vmem>>, vector<16x128xbf16>
      tpu.vector_store %arg6[%c0_18, %c0_19], %29 {strides = array<i32>} : memref<16x128xbf16, #tpu.memory_space<vmem>>, vector<16x128xbf16>,
    } else {
    }
    return
  }
  func.func @transform_0(%arg0: i32, %arg1: i32, %arg2: i32) -> (i32, i32) {
    %c0_i32 = arith.constant 0 : i32
    return %arg0, %arg2 : i32, i32
  }
  func.func @transform_1(%arg0: i32, %arg1: i32, %arg2: i32) -> (i32, i32) {
    %c0_i32 = arith.constant 0 : i32
    return %arg2, %arg1 : i32, i32
  }
  func.func @transform_2(%arg0: i32, %arg1: i32, %arg2: i32) -> (i32, i32) {
    %c0_i32 = arith.constant 0 : i32
    %c0_i32_0 = arith.constant 0 : i32
    return %c0_i32, %arg1 : i32, i32
  }
  func.func @transform_3(%arg0: i32, %arg1: i32, %arg2: i32) -> (i32, i32) {
    %c0_i32 = arith.constant 0 : i32
    return %arg0, %arg1 : i32, i32
  }
}

module attributes {stable_mosaic.version = 11 : i64} {
  func.func @_matmul_res_ln_kernel(%arg0: i32, %arg1: i32, %arg2: memref<16x128xbf16, #tpu.memory_space<vmem>>, %arg3: memref<128x64xbf16, #tpu.memory_space<vmem>>, %arg4: memref<1x64xf32, #tpu.memory_space<vmem>>, %arg5: memref<16x64xbf16, #tpu.memory_space<vmem>>, %arg6: memref<1x64xf32, #tpu.memory_space<vmem>>, %arg7: memref<1x64xf32, #tpu.memory_space<vmem>>, %arg8: memref<16x64xbf16, #tpu.memory_space<vmem>>, %arg9: memref<16x64xf32, #tpu.memory_space<vmem>>) attributes {dimension_semantics = [#tpu.dimension_semantics<parallel>, #tpu.dimension_semantics<arbitrary>], iteration_bounds = array<i64: 1, 1>, scalar_prefetch = 0 : i64, scratch_operands = 1 : i64, tpu.core_type = #tpu.core_type<tc>, window_params = [{transform_indices = @transform_0, window_bounds = array<i64: 16, 128>}, {transform_indices = @transform_1, window_bounds = array<i64: 128, 64>}, {pipeline_mode = #tpu.pipeline_mode<synchronous>, transform_indices = @transform_2, window_bounds = array<i64: 1, 64>}, {transform_indices = @transform_3, window_bounds = array<i64: 16, 64>}, {pipeline_mode = #tpu.pipeline_mode<synchronous>, transform_indices = @transform_4, window_bounds = array<i64: 1, 64>}, {pipeline_mode = #tpu.pipeline_mode<synchronous>, transform_indices = @transform_5, window_bounds = array<i64: 1, 64>}, {transform_indices = @transform_6, window_bounds = array<i64: 16, 64>}]} {
    %c0_i32 = arith.constant 0 : i32
    %0 = arith.cmpi eq, %arg1, %c0_i32 : i32
    %1 = arith.extui %0 : i1 to i32
    %c0_i32_0 = arith.constant 0 : i32
    %2 = arith.cmpi ne, %1, %c0_i32_0 : i32
    scf.if %2 {
      %cst_10 = arith.constant 0.000000e+00 : f32
      %12 = vector.broadcast %cst_10 : f32 to vector<16x64xf32>
      %c0_11 = arith.constant 0 : index
      %c0_12 = arith.constant 0 : index
      %13 = vector.load %arg9[%c0_11, %c0_12] : memref<16x64xf32, #tpu.memory_space<vmem>>, vector<16x64xf32>
      tpu.vector_store %arg9[%c0_11, %c0_12], %12 {strides = array<i32>} : memref<16x64xf32, #tpu.memory_space<vmem>>, vector<16x64xf32>,
    } else {
    }
    %c0 = arith.constant 0 : index
    %c0_1 = arith.constant 0 : index
    %3 = vector.load %arg9[%c0, %c0_1] : memref<16x64xf32, #tpu.memory_space<vmem>>, vector<16x64xf32>
    %c0_2 = arith.constant 0 : index
    %c0_3 = arith.constant 0 : index
    %4 = vector.load %arg2[%c0_2, %c0_3] : memref<16x128xbf16, #tpu.memory_space<vmem>>, vector<16x128xbf16>
    %c0_4 = arith.constant 0 : index
    %c0_5 = arith.constant 0 : index
    %5 = vector.load %arg3[%c0_4, %c0_5] : memref<128x64xbf16, #tpu.memory_space<vmem>>, vector<128x64xbf16>
    %cst = arith.constant dense<0.000000e+00> : vector<16x64xf32>
    %6 = tpu.matmul %4, %5, %cst {dimension_numbers = #tpu.dot_dimension_numbers<[1], [0], [0], [1], [0, 0, 1, 1], [], []>} : vector<16x128xbf16>, vector<128x64xbf16>, vector<16x64xf32> -> vector<16x64xf32>
    %7 = arith.addf %3, %6 : vector<16x64xf32>
    %c0_6 = arith.constant 0 : index
    %c0_7 = arith.constant 0 : index
    %8 = vector.load %arg9[%c0_6, %c0_7] : memref<16x64xf32, #tpu.memory_space<vmem>>, vector<16x64xf32>
    tpu.vector_store %arg9[%c0_6, %c0_7], %7 {strides = array<i32>} : memref<16x64xf32, #tpu.memory_space<vmem>>, vector<16x64xf32>,
    %c0_i32_8 = arith.constant 0 : i32
    %9 = arith.cmpi eq, %arg1, %c0_i32_8 : i32
    %10 = arith.extui %9 : i1 to i32
    %c0_i32_9 = arith.constant 0 : i32
    %11 = arith.cmpi ne, %10, %c0_i32_9 : i32
    scf.if %11 {
      %c0_10 = arith.constant 0 : index
      %c0_11 = arith.constant 0 : index
      %12 = vector.load %arg9[%c0_10, %c0_11] : memref<16x64xf32, #tpu.memory_space<vmem>>, vector<16x64xf32>
      %c0_12 = arith.constant 0 : index
      %c0_13 = arith.constant 0 : index
      %13 = vector.load %arg4[%c0_12, %c0_13] : memref<1x64xf32, #tpu.memory_space<vmem>>, vector<1x64xf32>
      %14 = vector.broadcast %13 : vector<1x64xf32> to vector<16x64xf32>
      %15 = arith.addf %12, %14 : vector<16x64xf32>
      %c0_14 = arith.constant 0 : index
      %c0_15 = arith.constant 0 : index
      %16 = vector.load %arg5[%c0_14, %c0_15] : memref<16x64xbf16, #tpu.memory_space<vmem>>, vector<16x64xbf16>
      %17 = arith.extf %16 : vector<16x64xbf16> to vector<16x64xf32>
      %18 = arith.addf %15, %17 : vector<16x64xf32>
      %cst_16 = arith.constant dense<0.000000e+00> : vector<16xf32>
      %19 = vector.multi_reduction <add>, %18, %cst_16 [1] : vector<16x64xf32> to vector<16xf32>
      %20 = vector.shape_cast %19 : vector<16xf32> to vector<16x1xf32>
      %cst_17 = arith.constant 6.400000e+01 : f32
      %21 = vector.broadcast %cst_17 : f32 to vector<16x1xf32>
      %22 = arith.divf %20, %21 : vector<16x1xf32>
      %23 = vector.broadcast %22 : vector<16x1xf32> to vector<16x64xf32>
      %24 = arith.subf %18, %23 : vector<16x64xf32>
      %25 = arith.mulf %24, %24 : vector<16x64xf32>
      %cst_18 = arith.constant dense<0.000000e+00> : vector<16xf32>
      %26 = vector.multi_reduction <add>, %25, %cst_18 [1] : vector<16x64xf32> to vector<16xf32>
      %27 = vector.shape_cast %26 : vector<16xf32> to vector<16x1xf32>
      %cst_19 = arith.constant 6.400000e+01 : f32
      %28 = vector.broadcast %cst_19 : f32 to vector<16x1xf32>
      %29 = arith.divf %27, %28 : vector<16x1xf32>
      %30 = vector.broadcast %22 : vector<16x1xf32> to vector<16x64xf32>
      %31 = arith.subf %18, %30 : vector<16x64xf32>
      %cst_20 = arith.constant 9.99999974E-6 : f32
      %32 = vector.broadcast %cst_20 : f32 to vector<16x1xf32>
      %33 = arith.addf %29, %32 : vector<16x1xf32>
      %34 = math.rsqrt %33 : vector<16x1xf32>
      %35 = vector.broadcast %34 : vector<16x1xf32> to vector<16x64xf32>
      %36 = arith.mulf %31, %35 : vector<16x64xf32>
      %c0_21 = arith.constant 0 : index
      %c0_22 = arith.constant 0 : index
      %37 = vector.load %arg6[%c0_21, %c0_22] : memref<1x64xf32, #tpu.memory_space<vmem>>, vector<1x64xf32>
      %38 = vector.broadcast %37 : vector<1x64xf32> to vector<16x64xf32>
      %39 = arith.mulf %36, %38 : vector<16x64xf32>
      %c0_23 = arith.constant 0 : index
      %c0_24 = arith.constant 0 : index
      %40 = vector.load %arg7[%c0_23, %c0_24] : memref<1x64xf32, #tpu.memory_space<vmem>>, vector<1x64xf32>
      %41 = vector.broadcast %40 : vector<1x64xf32> to vector<16x64xf32>
      %42 = arith.addf %39, %41 : vector<16x64xf32>
      %43 = arith.truncf %42 : vector<16x64xf32> to vector<16x64xbf16>
      %c0_25 = arith.constant 0 : index
      %c0_26 = arith.constant 0 : index
      %44 = vector.load %arg8[%c0_25, %c0_26] : memref<16x64xbf16, #tpu.memory_space<vmem>>, vector<16x64xbf16>
      tpu.vector_store %arg8[%c0_25, %c0_26], %43 {strides = array<i32>} : memref<16x64xbf16, #tpu.memory_space<vmem>>, vector<16x64xbf16>,
    } else {
    }
    return
  }
  func.func @transform_0(%arg0: i32, %arg1: i32) -> (i32, i32) {
    %c0_i32 = arith.constant 0 : i32
    return %arg0, %arg1 : i32, i32
  }
  func.func @transform_1(%arg0: i32, %arg1: i32) -> (i32, i32) {
    %c0_i32 = arith.constant 0 : i32
    %c0_i32_0 = arith.constant 0 : i32
    return %arg1, %c0_i32 : i32, i32
  }
  func.func @transform_2(%arg0: i32, %arg1: i32) -> (i32, i32) {
    %c0_i32 = arith.constant 0 : i32
    %c0_i32_0 = arith.constant 0 : i32
    %c0_i32_1 = arith.constant 0 : i32
    return %c0_i32, %c0_i32_0 : i32, i32
  }
  func.func @transform_3(%arg0: i32, %arg1: i32) -> (i32, i32) {
    %c0_i32 = arith.constant 0 : i32
    %c0_i32_0 = arith.constant 0 : i32
    return %arg0, %c0_i32 : i32, i32
  }
  func.func @transform_4(%arg0: i32, %arg1: i32) -> (i32, i32) {
    %c0_i32 = arith.constant 0 : i32
    %c0_i32_0 = arith.constant 0 : i32
    %c0_i32_1 = arith.constant 0 : i32
    return %c0_i32, %c0_i32_0 : i32, i32
  }
  func.func @transform_5(%arg0: i32, %arg1: i32) -> (i32, i32) {
    %c0_i32 = arith.constant 0 : i32
    %c0_i32_0 = arith.constant 0 : i32
    %c0_i32_1 = arith.constant 0 : i32
    return %c0_i32, %c0_i32_0 : i32, i32
  }
  func.func @transform_6(%arg0: i32, %arg1: i32) -> (i32, i32) {
    %c0_i32 = arith.constant 0 : i32
    %c0_i32_0 = arith.constant 0 : i32
    return %arg0, %c0_i32 : i32, i32
  }
}

module attributes {stable_mosaic.version = 11 : i64} {
  func.func @_matmul_kernel(%arg0: i32, %arg1: i32, %arg2: i32, %arg3: memref<16x64xbf16, #tpu.memory_space<vmem>>, %arg4: memref<64x64xbf16, #tpu.memory_space<vmem>>, %arg5: memref<1x64xf32, #tpu.memory_space<vmem>>, %arg6: memref<16x64xf32, #tpu.memory_space<vmem>>, %arg7: memref<16x64xf32, #tpu.memory_space<vmem>>) attributes {dimension_semantics = [#tpu.dimension_semantics<parallel>, #tpu.dimension_semantics<parallel>, #tpu.dimension_semantics<arbitrary>], iteration_bounds = array<i64: 1, 1, 1>, scalar_prefetch = 0 : i64, scratch_operands = 1 : i64, tpu.core_type = #tpu.core_type<tc>, window_params = [{transform_indices = @transform_0, window_bounds = array<i64: 16, 64>}, {transform_indices = @transform_1, window_bounds = array<i64: 64, 64>}, {transform_indices = @transform_2, window_bounds = array<i64: 1, 64>}, {transform_indices = @transform_3, window_bounds = array<i64: 16, 64>}]} {
    %c0_i32 = arith.constant 0 : i32
    %0 = arith.cmpi eq, %arg2, %c0_i32 : i32
    %1 = arith.extui %0 : i1 to i32
    %c0_i32_0 = arith.constant 0 : i32
    %2 = arith.cmpi ne, %1, %c0_i32_0 : i32
    scf.if %2 {
      %cst_10 = arith.constant 0.000000e+00 : f32
      %12 = vector.broadcast %cst_10 : f32 to vector<16x64xf32>
      %c0_11 = arith.constant 0 : index
      %c0_12 = arith.constant 0 : index
      %13 = vector.load %arg7[%c0_11, %c0_12] : memref<16x64xf32, #tpu.memory_space<vmem>>, vector<16x64xf32>
      tpu.vector_store %arg7[%c0_11, %c0_12], %12 {strides = array<i32>} : memref<16x64xf32, #tpu.memory_space<vmem>>, vector<16x64xf32>,
    } else {
    }
    %c0 = arith.constant 0 : index
    %c0_1 = arith.constant 0 : index
    %3 = vector.load %arg7[%c0, %c0_1] : memref<16x64xf32, #tpu.memory_space<vmem>>, vector<16x64xf32>
    %c0_2 = arith.constant 0 : index
    %c0_3 = arith.constant 0 : index
    %4 = vector.load %arg3[%c0_2, %c0_3] : memref<16x64xbf16, #tpu.memory_space<vmem>>, vector<16x64xbf16>
    %c0_4 = arith.constant 0 : index
    %c0_5 = arith.constant 0 : index
    %5 = vector.load %arg4[%c0_4, %c0_5] : memref<64x64xbf16, #tpu.memory_space<vmem>>, vector<64x64xbf16>
    %cst = arith.constant dense<0.000000e+00> : vector<16x64xf32>
    %6 = tpu.matmul %4, %5, %cst {dimension_numbers = #tpu.dot_dimension_numbers<[1], [0], [0], [1], [0, 0, 1, 1], [], []>} : vector<16x64xbf16>, vector<64x64xbf16>, vector<16x64xf32> -> vector<16x64xf32>
    %7 = arith.addf %3, %6 : vector<16x64xf32>
    %c0_6 = arith.constant 0 : index
    %c0_7 = arith.constant 0 : index
    %8 = vector.load %arg7[%c0_6, %c0_7] : memref<16x64xf32, #tpu.memory_space<vmem>>, vector<16x64xf32>
    tpu.vector_store %arg7[%c0_6, %c0_7], %7 {strides = array<i32>} : memref<16x64xf32, #tpu.memory_space<vmem>>, vector<16x64xf32>,
    %c0_i32_8 = arith.constant 0 : i32
    %9 = arith.cmpi eq, %arg2, %c0_i32_8 : i32
    %10 = arith.extui %9 : i1 to i32
    %c0_i32_9 = arith.constant 0 : i32
    %11 = arith.cmpi ne, %10, %c0_i32_9 : i32
    scf.if %11 {
      %c0_10 = arith.constant 0 : index
      %c0_11 = arith.constant 0 : index
      %12 = vector.load %arg7[%c0_10, %c0_11] : memref<16x64xf32, #tpu.memory_space<vmem>>, vector<16x64xf32>
      %c0_12 = arith.constant 0 : index
      %c0_13 = arith.constant 0 : index
      %13 = vector.load %arg5[%c0_12, %c0_13] : memref<1x64xf32, #tpu.memory_space<vmem>>, vector<1x64xf32>
      %14 = vector.broadcast %13 : vector<1x64xf32> to vector<16x64xf32>
      %15 = arith.addf %12, %14 : vector<16x64xf32>
      %c0_14 = arith.constant 0 : index
      %c0_15 = arith.constant 0 : index
      %16 = vector.load %arg6[%c0_14, %c0_15] : memref<16x64xf32, #tpu.memory_space<vmem>>, vector<16x64xf32>
      tpu.vector_store %arg6[%c0_14, %c0_15], %15 {strides = array<i32>} : memref<16x64xf32, #tpu.memory_space<vmem>>, vector<16x64xf32>,
    } else {
    }
    return
  }
  func.func @transform_0(%arg0: i32, %arg1: i32, %arg2: i32) -> (i32, i32) {
    %c0_i32 = arith.constant 0 : i32
    return %arg0, %arg2 : i32, i32
  }
  func.func @transform_1(%arg0: i32, %arg1: i32, %arg2: i32) -> (i32, i32) {
    %c0_i32 = arith.constant 0 : i32
    return %arg2, %arg1 : i32, i32
  }
  func.func @transform_2(%arg0: i32, %arg1: i32, %arg2: i32) -> (i32, i32) {
    %c0_i32 = arith.constant 0 : i32
    %c0_i32_0 = arith.constant 0 : i32
    return %c0_i32, %arg1 : i32, i32
  }
  func.func @transform_3(%arg0: i32, %arg1: i32, %arg2: i32) -> (i32, i32) {
    %c0_i32 = arith.constant 0 : i32
    return %arg0, %arg1 : i32, i32
  }
}

module attributes {stable_mosaic.version = 11 : i64} {
  func.func @_ln_kernel(%arg0: i32, %arg1: memref<16x64xbf16, #tpu.memory_space<vmem>>, %arg2: memref<1x64xf32, #tpu.memory_space<vmem>>, %arg3: memref<1x64xf32, #tpu.memory_space<vmem>>, %arg4: memref<16x64xbf16, #tpu.memory_space<vmem>>) attributes {dimension_semantics = [#tpu.dimension_semantics<parallel>], iteration_bounds = array<i64: 1>, scalar_prefetch = 0 : i64, scratch_operands = 0 : i64, tpu.core_type = #tpu.core_type<tc>, window_params = [{transform_indices = @transform_0, window_bounds = array<i64: 16, 64>}, {pipeline_mode = #tpu.pipeline_mode<synchronous>, transform_indices = @transform_1, window_bounds = array<i64: 1, 64>}, {pipeline_mode = #tpu.pipeline_mode<synchronous>, transform_indices = @transform_2, window_bounds = array<i64: 1, 64>}, {transform_indices = @transform_3, window_bounds = array<i64: 16, 64>}]} {
    %c0 = arith.constant 0 : index
    %c0_0 = arith.constant 0 : index
    %0 = vector.load %arg1[%c0, %c0_0] : memref<16x64xbf16, #tpu.memory_space<vmem>>, vector<16x64xbf16>
    %1 = arith.extf %0 : vector<16x64xbf16> to vector<16x64xf32>
    %cst = arith.constant dense<0.000000e+00> : vector<16xf32>
    %2 = vector.multi_reduction <add>, %1, %cst [1] : vector<16x64xf32> to vector<16xf32>
    %3 = vector.shape_cast %2 : vector<16xf32> to vector<16x1xf32>
    %cst_1 = arith.constant 6.400000e+01 : f32
    %4 = vector.broadcast %cst_1 : f32 to vector<16x1xf32>
    %5 = arith.divf %3, %4 : vector<16x1xf32>
    %6 = vector.broadcast %5 : vector<16x1xf32> to vector<16x64xf32>
    %7 = arith.subf %1, %6 : vector<16x64xf32>
    %8 = arith.mulf %7, %7 : vector<16x64xf32>
    %cst_2 = arith.constant dense<0.000000e+00> : vector<16xf32>
    %9 = vector.multi_reduction <add>, %8, %cst_2 [1] : vector<16x64xf32> to vector<16xf32>
    %10 = vector.shape_cast %9 : vector<16xf32> to vector<16x1xf32>
    %cst_3 = arith.constant 6.400000e+01 : f32
    %11 = vector.broadcast %cst_3 : f32 to vector<16x1xf32>
    %12 = arith.divf %10, %11 : vector<16x1xf32>
    %13 = vector.broadcast %5 : vector<16x1xf32> to vector<16x64xf32>
    %14 = arith.subf %1, %13 : vector<16x64xf32>
    %cst_4 = arith.constant 9.99999974E-6 : f32
    %15 = vector.broadcast %cst_4 : f32 to vector<16x1xf32>
    %16 = arith.addf %12, %15 : vector<16x1xf32>
    %17 = math.rsqrt %16 : vector<16x1xf32>
    %18 = vector.broadcast %17 : vector<16x1xf32> to vector<16x64xf32>
    %19 = arith.mulf %14, %18 : vector<16x64xf32>
    %c0_5 = arith.constant 0 : index
    %c0_6 = arith.constant 0 : index
    %20 = vector.load %arg2[%c0_5, %c0_6] : memref<1x64xf32, #tpu.memory_space<vmem>>, vector<1x64xf32>
    %21 = vector.broadcast %20 : vector<1x64xf32> to vector<16x64xf32>
    %22 = arith.mulf %19, %21 : vector<16x64xf32>
    %c0_7 = arith.constant 0 : index
    %c0_8 = arith.constant 0 : index
    %23 = vector.load %arg3[%c0_7, %c0_8] : memref<1x64xf32, #tpu.memory_space<vmem>>, vector<1x64xf32>
    %24 = vector.broadcast %23 : vector<1x64xf32> to vector<16x64xf32>
    %25 = arith.addf %22, %24 : vector<16x64xf32>
    %26 = arith.truncf %25 : vector<16x64xf32> to vector<16x64xbf16>
    %c0_9 = arith.constant 0 : index
    %c0_10 = arith.constant 0 : index
    %27 = vector.load %arg4[%c0_9, %c0_10] : memref<16x64xbf16, #tpu.memory_space<vmem>>, vector<16x64xbf16>
    tpu.vector_store %arg4[%c0_9, %c0_10], %26 {strides = array<i32>} : memref<16x64xbf16, #tpu.memory_space<vmem>>, vector<16x64xbf16>,
    return
  }
  func.func @transform_0(%arg0: i32) -> (i32, i32) {
    %c0_i32 = arith.constant 0 : i32
    %c0_i32_0 = arith.constant 0 : i32
    return %arg0, %c0_i32 : i32, i32
  }
  func.func @transform_1(%arg0: i32) -> (i32, i32) {
    %c0_i32 = arith.constant 0 : i32
    %c0_i32_0 = arith.constant 0 : i32
    %c0_i32_1 = arith.constant 0 : i32
    return %c0_i32, %c0_i32_0 : i32, i32
  }
  func.func @transform_2(%arg0: i32) -> (i32, i32) {
    %c0_i32 = arith.constant 0 : i32
    %c0_i32_0 = arith.constant 0 : i32
    %c0_i32_1 = arith.constant 0 : i32
    return %c0_i32, %c0_i32_0 : i32, i32
  }
  func.func @transform_3(%arg0: i32) -> (i32, i32) {
    %c0_i32 = arith.constant 0 : i32
    %c0_i32_0 = arith.constant 0 : i32
    return %arg0, %c0_i32 : i32, i32
  }
}

</mosaic_0001>

<llo_original>
// kernel: alibi_transformer_forward.12
$region0: #{alibi_transformer_forward.12}
  #allocation0 [shape = 'u32[]', space=smem, size = 0x4, offset = 0x4, fixed_abs, tag = 'smem constant byte address 0x4 - core index']
  #allocation1 [shape = 'u32[144,128]{1,0:T(1,128)}', space=vmem, size = 0x12000, scoped, tag = 'internal scratch']
  #allocation2 [shape = 'f32[16,192]{1,0:T(8,128)}', space=vmem, size = 0x4000, scoped, tag = 'scratch operand']
  %s0 = inlined_call_operand.vmem [shape: bf16[16,64], index: 0, kind: input, shape index: {}]
  %s1 = inlined_call_operand.vmem [shape: bf16[64,192], index: 1, kind: input, shape index: {}]
  %s2 = inlined_call_operand.vmem [shape: f32[1,192], index: 2, kind: input, shape index: {}]
  %s3 = inlined_call_operand.vmem [shape: bf16[16,192], index: 3, kind: output, shape index: {}]
  %s4 = sld [smem:[#allocation0]]
  $region30: #{alibi_transformer_forward.12} parent=0
    _
  %s6 = ssub.s32 1, %s4
  %s7 = scalar_select 0, %s6, %s4
  // Predicated region
  $region2: #{alibi_transformer_forward.12} parent=0 // pred_check
    _
  $region3: #{alibi_transformer_forward.12} parent=0 // pred_check_branch
    %9 = sbr.rel (0) target = $region5
  $region4: #{alibi_transformer_forward.12} parent=0 // pred_region
    _
  $region5: #{alibi_transformer_forward.12} parent=0 // pred_fallthru
    _
  // Predicated region
  $region6: #{alibi_transformer_forward.12} parent=0 // pred_check
    _
  $region7: #{alibi_transformer_forward.12} parent=0 // pred_check_branch
    %11 = sbr.rel (0) target = $region9
  $region8: #{alibi_transformer_forward.12} parent=0 // pred_region
    _
  $region9: #{alibi_transformer_forward.12} parent=0 // pred_fallthru
    _
  // Predicated region
  $region10: #{alibi_transformer_forward.12} parent=0 // pred_check
    _
  $region11: #{alibi_transformer_forward.12} parent=0 // pred_check_branch
    %13 = sbr.rel (0) target = $region13
  $region12: #{alibi_transformer_forward.12} parent=0 // pred_region
    _
  $region13: #{alibi_transformer_forward.12} parent=0 // pred_fallthru
    _
  %p15 = scmp.eq.s32.totalorder 0, 0
  // Predicated region
  $region14: #{alibi_transformer_forward.12} parent=0 // pred_check
    %p16 = pneg %p15
  $region15: #{alibi_transformer_forward.12} parent=0 // pred_check_branch
    %18 = sbr.rel (%p16) target = $region17
  $region16: #{alibi_transformer_forward.12} parent=0 // pred_region
    %19 = vst [vmem:[#allocation2] sm:$0xff] 0.0
    %vm20 = vcmask 523264
    %21 = vst.msk [vmem:[#allocation2 + $0x8] sm:$0xff] %vm20, 0.0
    %22 = vst [vmem:[#allocation2 + $0x10] sm:$0xff] 0.0
    %23 = vst.msk [vmem:[#allocation2 + $0x18] sm:$0xff] %vm20, 0.0
  $region17: #{alibi_transformer_forward.12} parent=0 // pred_fallthru
    _
  %v24 = vld [vmem:[#allocation2] sm:$0xff]
  %v25 = vld [vmem:[#allocation2 + $0x8] sm:$0xff]
  %v26 = vld [vmem:[#allocation2 + $0x10] sm:$0xff]
  %v27 = vld [vmem:[#allocation2 + $0x18] sm:$0xff]
  %v28 = vld [vmem:[%s0] sm:$0xf]
  %v29 = vld [vmem:[%s0 + $0x4] sm:$0xf]
  %v30 = vld [vmem:[%s1] sm:$0xff]
  %v31 = vld [vmem:[%s1 + $0x8] sm:$0xff]
  %v32 = vld [vmem:[%s1 + $0x10] sm:$0xff]
  %v33 = vld [vmem:[%s1 + $0x18] sm:$0xff]
  %v34 = vld [vmem:[%s1 + $0x20] sm:$0xff]
  %v35 = vld [vmem:[%s1 + $0x28] sm:$0xff]
  %v36 = vld [vmem:[%s1 + $0x30] sm:$0xff]
  %v37 = vld [vmem:[%s1 + $0x38] sm:$0xff]
  %v40 = vunpack.c.l.b16 %v28
  %v41 = vunpack.c.l.b16 %v29
  %v42 = vpack.c.b16 %v41, %v40
  %v51 = vunpack.c.l.b16 %v30
  %v52 = vunpack.c.h.b16 %v30
  %v53 = vunpack.c.l.b16 %v31
  %v54 = vunpack.c.h.b16 %v31
  %v55 = vunpack.c.l.b16 %v32
  %v56 = vunpack.c.h.b16 %v32
  %v57 = vunpack.c.l.b16 %v33
  %v58 = vunpack.c.h.b16 %v33
  %v59 = vunpack.c.l.b16 %v34
  %v60 = vunpack.c.h.b16 %v34
  %v61 = vunpack.c.l.b16 %v35
  %v62 = vunpack.c.h.b16 %v35
  %v63 = vunpack.c.l.b16 %v36
  %v64 = vunpack.c.h.b16 %v36
  %v65 = vunpack.c.l.b16 %v37
  %v66 = vunpack.c.h.b16 %v37
  %v67 = vpack.c.b16 %v53, %v51
  %v68 = vpack.c.b16 %v54, %v52
  %v69 = vpack.c.b16 %v57, %v55
  %v70 = vpack.c.b16 %v58, %v56
  %v71 = vpack.c.b16 %v61, %v59
  %v72 = vpack.c.b16 %v62, %v60
  %v73 = vpack.c.b16 %v65, %v63
  %v74 = vpack.c.b16 %v66, %v64
  %vm83 = vcmask 523264
  %v85 = vsel %vm83, %v42, 0
  %87 = vmatprep.subr.bf16.mxu0 0
  %88 = vmatpush1.bf16.msra.mxu0 0
  %89 = vmatprep.subr.bf16.mxu0 0
  %90 = vmatpush1.bf16.msra.mxu0 0
  %91 = vmatprep.subr.bf16.mxu0 0
  %92 = vmatpush1.bf16.msra.mxu0 0
  %93 = vmatprep.subr.bf16.mxu0 0
  %94 = vmatpush1.bf16.msra.mxu0 0
  %95 = vmatprep.subr.bf16.mxu0 %v74
  %96 = vmatpush1.bf16.msra.mxu0 %v73
  %97 = vmatprep.subr.bf16.mxu0 %v72
  %98 = vmatpush1.bf16.msra.mxu0 %v71
  %99 = vmatprep.subr.bf16.mxu0 %v70
  %100 = vmatpush1.bf16.msra.mxu0 %v69
  %101 = vmatprep.subr.bf16.mxu0 %v68
  %102 = vmatpush1.bf16.msra.mxu0 %v67
  %103 = vmatprep.subr.bf16.mxu0 0
  %104 = vmatpush2.bf16.msra.mxu0 0
  %105 = vmatprep.subr.bf16.mxu0 0
  %106 = vmatpush2.bf16.msra.mxu0 0
  %107 = vmatprep.subr.bf16.mxu0 0
  %108 = vmatpush2.bf16.msra.mxu0 0
  %109 = vmatprep.subr.bf16.mxu0 0
  %110 = vmatpush2.bf16.msra.mxu0 0
  %111 = vmatprep.subr.bf16.mxu0 0
  %112 = vmatpush2.bf16.msra.mxu0 0
  %113 = vmatprep.subr.bf16.mxu0 0
  %114 = vmatpush2.bf16.msra.mxu0 0
  %115 = vmatprep.subr.bf16.mxu0 0
  %116 = vmatpush2.bf16.msra.mxu0 0
  %117 = vmatprep.subr.bf16.mxu0 0
  %118 = vmatpush2.bf16.msra.mxu0 0
  %119 = vmatprep.mubr.bf16.mxu0 0
  %120 = vmatmul.mubr.bf16.gmra.mxu0 %v85
  %v121 = vpop.f32.mrf.mxu0
  %v122 = vadd.f32 0.0, %v121
  %v123 = vpop.f32.mrf.mxu0
  %v124 = vadd.f32 0.0, %v123
  %v125 = vpop.f32.mrf.mxu0
  %v126 = vadd.f32 0.0, %v125
  %v127 = vpop.f32.mrf.mxu0
  %v128 = vadd.f32 0.0, %v127
  %129 = vdwg.mxu0
  %v130 = vadd.f32 %v24, %v122
  %v131 = vadd.f32 %v25, %v124
  %v132 = vadd.f32 %v26, %v126
  %v133 = vadd.f32 %v27, %v128
  %134 = vst [vmem:[#allocation2] sm:$0xff] %v130
  %135 = vst.msk [vmem:[#allocation2 + $0x8] sm:$0xff] %vm83, %v131
  %136 = vst [vmem:[#allocation2 + $0x10] sm:$0xff] %v132
  %137 = vst.msk [vmem:[#allocation2 + $0x18] sm:$0xff] %vm83, %v133
  // Predicated region
  $region18: #{alibi_transformer_forward.12} parent=0 // pred_check
    %p138 = pneg %p15
  $region19: #{alibi_transformer_forward.12} parent=0 // pred_check_branch
    %140 = sbr.rel (%p138) target = $region21
  $region20: #{alibi_transformer_forward.12} parent=0 // pred_region
    %v141 = vld [vmem:[#allocation2] sm:$0xff]
    %v142 = vld [vmem:[#allocation2 + $0x8] sm:$0xff]
    %v143 = vld [vmem:[#allocation2 + $0x10] sm:$0xff]
    %v144 = vld [vmem:[#allocation2 + $0x18] sm:$0xff]
    %v145 = vld [vmem:[%s2] sm:$0x3]
    %v147 = vlaneseq
    %v148 = vshrl.u32 %v147, 7
    %v149 = vsub.s32 0, %v148
    %v150 = vrot.slane %v145, %v149
    %v151 = vlaneseq
    %v152 = vshrl.u32 %v151, 7
    %v153 = vsub.s32 1, %v152
    %v154 = vrot.slane %v145, %v153
    %v157 = vadd.f32 %v141, %v150
    %v158 = vadd.f32 %v142, %v154
    %v159 = vadd.f32 %v143, %v150
    %v160 = vadd.f32 %v144, %v154
    %v161 = vpack.c.bf16 %v159, %v157
    %v162 = vpack.c.bf16 %v160, %v158
    %v165 = vunpack.c.l.b16 %v161
    %v166 = vunpack.c.l.b16 %v162
    %v167 = vunpack.c.h.b16 %v161
    %v168 = vunpack.c.h.b16 %v162
    %v169 = vpack.c.b16 %v166, %v165
    %v170 = vpack.c.b16 %v168, %v167
    %vm173 = vcmask 1043456
    %vm174 = vcmask 523268
    %vm175 = vmor %vm174, %vm173
    %176 = vst.msk [vmem:[%s3] sm:$0xff] %vm175, %v169
    %177 = vst.msk [vmem:[%s3 + $0x8] sm:$0xff] %vm175, %v170
  $region21: #{alibi_transformer_forward.12} parent=0 // pred_fallthru
    _
  // Predicated region
  $region22: #{alibi_transformer_forward.12} parent=0 // pred_check
    _
  $region23: #{alibi_transformer_forward.12} parent=0 // pred_check_branch
    %179 = sbr.rel (0) target = $region25
  $region24: #{alibi_transformer_forward.12} parent=0 // pred_region
    _
  $region25: #{alibi_transformer_forward.12} parent=0 // pred_fallthru
    _
  // Predicated region
  $region26: #{alibi_transformer_forward.12} parent=0 // pred_check
    _
  $region27: #{alibi_transformer_forward.12} parent=0 // pred_check_branch
    %181 = sbr.rel (0) target = $region29
  $region28: #{alibi_transformer_forward.12} parent=0 // pred_region
    _
  $region29: #{alibi_transformer_forward.12} parent=0 // pred_fallthru
    _

// kernel: alibi_transformer_forward.13
$region0: #{alibi_transformer_forward.13}
  #allocation0 [shape = 'u32[]', space=smem, size = 0x4, offset = 0x4, fixed_abs, tag = 'smem constant byte address 0x4 - core index']
  #allocation1 [shape = 'u32[144,128]{1,0:T(1,128)}', space=vmem, size = 0x12000, scoped, tag = 'internal scratch']
  #allocation2 [shape = 'f32[8,1]{1,0:T(8,128)}', space=vmem, size = 0x1000, scoped, tag = 'scratch operand']
  #allocation3 [shape = 'f32[8,1]{1,0:T(8,128)}', space=vmem, size = 0x1000, scoped, tag = 'scratch operand']
  #allocation4 [shape = 'f32[8,16]{1,0:T(8,128)}', space=vmem, size = 0x1000, scoped, tag = 'scratch operand']
  #allocation5 [shape = 's32[1]{0}', space=sflag, size = 0x4, scoped, tag = 'scoped memory for alibi_transformer_forward.13']
  #allocation6 [shape = 'u8[512]{0}', space=smem, size = 0x200, scoped, tag = 'prefetched SMEM operand 0']
  %s0 = inlined_call_operand.vmem [shape: f32[4], index: 0, kind: input, shape index: {}]
  %s1 = inlined_call_operand.vmem [shape: bf16[2,4,8,16], index: 1, kind: input, shape index: {}]
  %s2 = inlined_call_operand.vmem [shape: bf16[2,4,16,8], index: 2, kind: input, shape index: {}]
  %s3 = inlined_call_operand.vmem [shape: bf16[2,4,8,16], index: 3, kind: input, shape index: {}]
  %s4 = inlined_call_operand.vmem [shape: bf16[2,4,8,16], index: 4, kind: output, shape index: {}]
  %s5 = sld [smem:[#allocation0]]
  $region57: #{alibi_transformer_forward.13} parent=0
    _
  %s7 = ssub.s32 1, %s5
  %s8 = scalar_select 0, %s7, %s5
  %s9 = sshll.u32 %s0, 4
  %s10 = int_to_ptr.vmem [resolvable:$true] %s9
  %12 = dma.vmem_to_smem %s10, 16, [#allocation6], [#allocation5]
  %13 = dma.done [#allocation5], 16
  %14 = sfence
  loop: start=0, step=1, limit=10
  $region2: #{alibi_transformer_forward.13} parent=0 // loop_pre_header
    _
  $region3: #{alibi_transformer_forward.13} parent=0 // loop_header
    %s16 = sphi 0, %s20
    %p17 = scmp.ge.s32.totalorder %s16, 10
    %s23 = sphi 0, %s49
    %s24 = sphi 0, %s45
    %s25 = sphi 0, %s41
    %s26 = sphi 0, %s37
    %s27 = sphi 0, %s23
    %s28 = sphi 0, %s24
    %s29 = sphi 0, %s25
    %s30 = sphi 0, %s26
    %s31 = sphi 0, %s27
    %s32 = sphi 0, %s28
    %s33 = sphi 0, %s29
    %s34 = sphi 0, %s30
    %s56 = sphi 0, %s58
    %s59 = sphi 0, %s56
    %s60 = sphi 0, %s59
    %s76 = sphi 0, %s60
    %s86 = sphi 0, %s88
    %s89 = sphi 0, %s86
    %s90 = sphi 0, %s89
    %s106 = sphi 0, %s90
    %s116 = sphi 0, %s118
    %s119 = sphi 0, %s116
    %s120 = sphi 0, %s119
    %s136 = sphi 0, %s120
    %s146 = sphi 0, %s148
    %s149 = sphi 0, %s146
    %s150 = sphi 0, %s149
    %s166 = sphi 0, %s150
  $region4: #{alibi_transformer_forward.13} parent=0 // loop_header_branch
    %19 = sbr.rel (%p17) target = $region8
  $region5: #{alibi_transformer_forward.13} parent=0 // loop_body
    %s21 = ssub.s32 %s16, 1
    %s22 = ssub.s32 %s16, 2
    %s35 = sadd.s32 1, %s26
    %p36 = scmp.ge.s32.totalorder %s35, 1
    %s37 = scalar_select %p36, 0, %s35
    %s38 = sadd.s32 1, %s25
    %s39 = scalar_select %p36, %s38, %s25
    %p40 = scmp.ge.s32.totalorder %s39, 1
    %s41 = scalar_select %p40, 0, %s39
    %s42 = sadd.s32 1, %s24
    %s43 = scalar_select %p40, %s42, %s24
    %p44 = scmp.ge.s32.totalorder %s43, 4
    %s45 = scalar_select %p44, 0, %s43
    %s46 = sadd.s32 1, %s23
    %s47 = scalar_select %p44, %s46, %s23
    %p48 = scmp.ge.s32.totalorder %s47, 2
    %s49 = scalar_select %p48, 0, %s47
    %s50 = ssub.s32 %s23, %s49
    %s51 = ssub.s32 %s24, %s45
    %s52 = sor.u32 %s50, %s51
    %s53 = ssub.s32 %s25, %s41
    %s54 = sor.u32 %s52, %s53
    %p55 = scmp.eq.s32.totalorder %s54, 0
    %s57 = sadd.s32 %s56, 1
    %s58 = scalar_select %p55, %s56, %s57
    %p61 = pneg %p55
    %p62 = scmp.eq.s32.totalorder %s16, 7
    %p63 = por %p61, %p62
    %p64 = scmp.ne.s32.totalorder %s56, %s59
    %p65 = scmp.eq.s32.totalorder %s16, 0
    %p66 = por %p64, %p65
    %p67 = scmp.ne.s32.totalorder %s56, %s59
    %p68 = scmp.eq.s32.totalorder %s21, 7
    %p69 = por %p67, %p68
    %p70 = scmp.ne.s32.totalorder %s59, %s60
    %p71 = scmp.eq.s32.totalorder %s21, 0
    %p72 = por %p70, %p71
    %p73 = scmp.ne.s32.totalorder %s59, %s60
    %p74 = scmp.eq.s32.totalorder %s22, 7
    %p75 = por %p73, %p74
    %p77 = scmp.ne.s32.totalorder %s60, %s76
    %p78 = scmp.eq.s32.totalorder %s22, 0
    %p79 = por %p77, %p78
    %s80 = ssub.s32 %s23, %s49
    %s81 = ssub.s32 %s24, %s45
    %s82 = sor.u32 %s80, %s81
    %s83 = ssub.s32 %s26, %s37
    %s84 = sor.u32 %s82, %s83
    %p85 = scmp.eq.s32.totalorder %s84, 0
    %s87 = sadd.s32 %s86, 1
    %s88 = scalar_select %p85, %s86, %s87
    %p91 = pneg %p85
    %p92 = scmp.eq.s32.totalorder %s16, 7
    %p93 = por %p91, %p92
    %p94 = scmp.ne.s32.totalorder %s86, %s89
    %p95 = scmp.eq.s32.totalorder %s16, 0
    %p96 = por %p94, %p95
    %p97 = scmp.ne.s32.totalorder %s86, %s89
    %p98 = scmp.eq.s32.totalorder %s21, 7
    %p99 = por %p97, %p98
    %p100 = scmp.ne.s32.totalorder %s89, %s90
    %p101 = scmp.eq.s32.totalorder %s21, 0
    %p102 = por %p100, %p101
    %p103 = scmp.ne.s32.totalorder %s89, %s90
    %p104 = scmp.eq.s32.totalorder %s22, 7
    %p105 = por %p103, %p104
    %p107 = scmp.ne.s32.totalorder %s90, %s106
    %p108 = scmp.eq.s32.totalorder %s22, 0
    %p109 = por %p107, %p108
    %s110 = ssub.s32 %s23, %s49
    %s111 = ssub.s32 %s24, %s45
    %s112 = sor.u32 %s110, %s111
    %s113 = ssub.s32 %s26, %s37
    %s114 = sor.u32 %s112, %s113
    %p115 = scmp.eq.s32.totalorder %s114, 0
    %s117 = sadd.s32 %s116, 1
    %s118 = scalar_select %p115, %s116, %s117
    %p121 = pneg %p115
    %p122 = scmp.eq.s32.totalorder %s16, 7
    %p123 = por %p121, %p122
    %p124 = scmp.ne.s32.totalorder %s116, %s119
    %p125 = scmp.eq.s32.totalorder %s16, 0
    %p126 = por %p124, %p125
    %p127 = scmp.ne.s32.totalorder %s116, %s119
    %p128 = scmp.eq.s32.totalorder %s21, 7
    %p129 = por %p127, %p128
    %p130 = scmp.ne.s32.totalorder %s119, %s120
    %p131 = scmp.eq.s32.totalorder %s21, 0
    %p132 = por %p130, %p131
    %p133 = scmp.ne.s32.totalorder %s119, %s120
    %p134 = scmp.eq.s32.totalorder %s22, 7
    %p135 = por %p133, %p134
    %p137 = scmp.ne.s32.totalorder %s120, %s136
    %p138 = scmp.eq.s32.totalorder %s22, 0
    %p139 = por %p137, %p138
    %s140 = ssub.s32 %s23, %s49
    %s141 = ssub.s32 %s24, %s45
    %s142 = sor.u32 %s140, %s141
    %s143 = ssub.s32 %s25, %s41
    %s144 = sor.u32 %s142, %s143
    %p145 = scmp.eq.s32.totalorder %s144, 0
    %s147 = sadd.s32 %s146, 1
    %s148 = scalar_select %p145, %s146, %s147
    %p151 = pneg %p145
    %p152 = scmp.eq.s32.totalorder %s16, 7
    %p153 = por %p151, %p152
    %p154 = scmp.ne.s32.totalorder %s146, %s149
    %p155 = scmp.eq.s32.totalorder %s16, 0
    %p156 = por %p154, %p155
    %p157 = scmp.ne.s32.totalorder %s146, %s149
    %p158 = scmp.eq.s32.totalorder %s21, 7
    %p159 = por %p157, %p158
    %p160 = scmp.ne.s32.totalorder %s149, %s150
    %p161 = scmp.eq.s32.totalorder %s21, 0
    %p162 = por %p160, %p161
    %p163 = scmp.ne.s32.totalorder %s149, %s150
    %p164 = scmp.eq.s32.totalorder %s22, 7
    %p165 = por %p163, %p164
    %p167 = scmp.ne.s32.totalorder %s150, %s166
    %p168 = scmp.eq.s32.totalorder %s22, 0
    %p169 = por %p167, %p168
    %p170 = scmp.le.s32.totalorder 1, %s16
    %p171 = scmp.lt.s32.totalorder %s16, 9
    %p172 = pnand %p170, %p171
    %p173 = pneg %p172
    // Predicated region
    $region9: #{alibi_transformer_forward.13} parent=5 // pred_check
      _
    $region10: #{alibi_transformer_forward.13} parent=5 // pred_check_branch
      %175 = sbr.rel (%p172) target = $region12
    $region11: #{alibi_transformer_forward.13} parent=5 // pred_region
      %s176 = ssub.s32 %s16, 1
    $region12: #{alibi_transformer_forward.13} parent=5 // pred_fallthru
      _
    %p177 = scmp.lt.s32.totalorder %s16, 8
    // Predicated region
    $region13: #{alibi_transformer_forward.13} parent=5 // pred_check
      %p178 = pneg %p177
    $region14: #{alibi_transformer_forward.13} parent=5 // pred_check_branch
      %180 = sbr.rel (%p178) target = $region16
    $region15: #{alibi_transformer_forward.13} parent=5 // pred_region
      // Predicated region
      $region17: #{alibi_transformer_forward.13} parent=15 // pred_check
        %p181 = pneg %p66
      $region18: #{alibi_transformer_forward.13} parent=15 // pred_check_branch
        %183 = sbr.rel (%p181) target = $region20
      $region19: #{alibi_transformer_forward.13} parent=15 // pred_region
        %p184 = scmp.lt.s32.totalorder %s23, 1
        %s185 = scalar_select %p184, %s23, 1
        %p186 = scmp.lt.s32.totalorder %s24, 3
        %s187 = scalar_select %p186, %s24, 3
        %p188 = scmp.lt.s32.totalorder %s25, 0
        %s189 = scalar_select %p188, %s25, 0
        %s190 = sadd.s32 %s189, %s187
        %s191 = smul.addr %s185, 4
        %s192 = sadd.s32 %s190, %s191
        %s193 = smul.addr %s192, 4
        %s194 = scalar_lea.vmem %s1, %s193
      $region20: #{alibi_transformer_forward.13} parent=15 // pred_fallthru
        _
      // Predicated region
      $region21: #{alibi_transformer_forward.13} parent=15 // pred_check
        %p195 = pneg %p96
      $region22: #{alibi_transformer_forward.13} parent=15 // pred_check_branch
        %197 = sbr.rel (%p195) target = $region24
      $region23: #{alibi_transformer_forward.13} parent=15 // pred_region
        %p198 = scmp.lt.s32.totalorder %s23, 1
        %s199 = scalar_select %p198, %s23, 1
        %p200 = scmp.lt.s32.totalorder %s24, 3
        %s201 = scalar_select %p200, %s24, 3
        %p202 = scmp.lt.s32.totalorder %s26, 0
        %s203 = scalar_select %p202, %s26, 0
        %s204 = smul.addr %s201, 2
        %s205 = sadd.s32 %s203, %s204
        %s206 = smul.addr %s199, 8
        %s207 = sadd.s32 %s205, %s206
        %s208 = smul.addr %s207, 4
        %s209 = scalar_lea.vmem %s2, %s208
      $region24: #{alibi_transformer_forward.13} parent=15 // pred_fallthru
        _
      // Predicated region
      $region25: #{alibi_transformer_forward.13} parent=15 // pred_check
        %p210 = pneg %p126
      $region26: #{alibi_transformer_forward.13} parent=15 // pred_check_branch
        %212 = sbr.rel (%p210) target = $region28
      $region27: #{alibi_transformer_forward.13} parent=15 // pred_region
        %p213 = scmp.lt.s32.totalorder %s23, 1
        %s214 = scalar_select %p213, %s23, 1
        %p215 = scmp.lt.s32.totalorder %s24, 3
        %s216 = scalar_select %p215, %s24, 3
        %p217 = scmp.lt.s32.totalorder %s26, 0
        %s218 = scalar_select %p217, %s26, 0
        %s219 = sadd.s32 %s218, %s216
        %s220 = smul.addr %s214, 4
        %s221 = sadd.s32 %s219, %s220
        %s222 = smul.addr %s221, 4
        %s223 = scalar_lea.vmem %s3, %s222
      $region28: #{alibi_transformer_forward.13} parent=15 // pred_fallthru
        _
    $region16: #{alibi_transformer_forward.13} parent=5 // pred_fallthru
      _
    %p224 = scmp.le.s32.totalorder 1, %s16
    %p225 = scmp.lt.s32.totalorder %s16, 9
    %p226 = pnand %p224, %p225
    %p227 = pneg %p226
    // Predicated region
    $region29: #{alibi_transformer_forward.13} parent=5 // pred_check
      _
    $region30: #{alibi_transformer_forward.13} parent=5 // pred_check_branch
      %229 = sbr.rel (%p226) target = $region32
    $region31: #{alibi_transformer_forward.13} parent=5 // pred_region
      %s230 = ssub.s32 %s16, 1
      %p231 = scmp.lt.s32.totalorder %s27, 1
      %s232 = scalar_select %p231, %s27, 1
      %p233 = scmp.lt.s32.totalorder %s28, 3
      %s234 = scalar_select %p233, %s28, 3
      %p235 = scmp.lt.s32.totalorder %s29, 0
      %s236 = scalar_select %p235, %s29, 0
      %s237 = sadd.s32 %s236, %s234
      %s238 = smul.addr %s232, 4
      %s239 = sadd.s32 %s237, %s238
      %s240 = smul.addr %s239, 4
      %s241 = scalar_lea.vmem %s1, %s240
      %p242 = pneg %p72
      %p243 = pneg %p69
      %p244 = scmp.lt.s32.totalorder %s27, 1
      %s245 = scalar_select %p244, %s27, 1
      %p246 = scmp.lt.s32.totalorder %s28, 3
      %s247 = scalar_select %p246, %s28, 3
      %p248 = scmp.lt.s32.totalorder %s30, 0
      %s249 = scalar_select %p248, %s30, 0
      %s250 = smul.addr %s247, 2
      %s251 = sadd.s32 %s249, %s250
      %s252 = smul.addr %s245, 8
      %s253 = sadd.s32 %s251, %s252
      %s254 = smul.addr %s253, 4
      %s255 = scalar_lea.vmem %s2, %s254
      %p256 = pneg %p102
      %p257 = pneg %p99
      %p258 = scmp.lt.s32.totalorder %s27, 1
      %s259 = scalar_select %p258, %s27, 1
      %p260 = scmp.lt.s32.totalorder %s28, 3
      %s261 = scalar_select %p260, %s28, 3
      %p262 = scmp.lt.s32.totalorder %s30, 0
      %s263 = scalar_select %p262, %s30, 0
      %s264 = sadd.s32 %s263, %s261
      %s265 = smul.addr %s259, 4
      %s266 = sadd.s32 %s264, %s265
      %s267 = smul.addr %s266, 4
      %s268 = scalar_lea.vmem %s3, %s267
      %p269 = pneg %p132
      %p270 = pneg %p129
      %p271 = pneg %p162
      %p272 = pneg %p159
      %p273 = scmp.lt.s32.totalorder %s27, 1
      %s274 = scalar_select %p273, %s27, 1
      %p275 = scmp.lt.s32.totalorder %s28, 3
      %s276 = scalar_select %p275, %s28, 3
      %p277 = scmp.lt.s32.totalorder %s29, 0
      %s278 = scalar_select %p277, %s29, 0
      %s279 = sadd.s32 %s278, %s276
      %s280 = smul.addr %s274, 4
      %s281 = sadd.s32 %s279, %s280
      %s282 = smul.addr %s281, 4
      %s283 = scalar_lea.vmem %s4, %s282
      %p284 = scmp.lt.s32.totalorder %s27, 1
      %s285 = scalar_select %p284, %s27, 1
      %p286 = scmp.lt.s32.totalorder %s28, 3
      %s287 = scalar_select %p286, %s28, 3
      %p288 = scmp.lt.s32.totalorder %s29, 0
      %s289 = scalar_select %p288, %s29, 0
      %s290 = sadd.s32 %s289, %s287
      %s291 = smul.addr %s285, 4
      %s292 = sadd.s32 %s290, %s291
      %s293 = smul.addr %s292, 4
      %s294 = scalar_lea.vmem %s1, %s293
      %p295 = scmp.lt.s32.totalorder %s27, 1
      %s296 = scalar_select %p295, %s27, 1
      %p297 = scmp.lt.s32.totalorder %s28, 3
      %s298 = scalar_select %p297, %s28, 3
      %p299 = scmp.lt.s32.totalorder %s30, 0
      %s300 = scalar_select %p299, %s30, 0
      %s301 = smul.addr %s298, 2
      %s302 = sadd.s32 %s300, %s301
      %s303 = smul.addr %s296, 8
      %s304 = sadd.s32 %s302, %s303
      %s305 = smul.addr %s304, 4
      %s306 = scalar_lea.vmem %s2, %s305
      %p307 = scmp.lt.s32.totalorder %s27, 1
      %s308 = scalar_select %p307, %s27, 1
      %p309 = scmp.lt.s32.totalorder %s28, 3
      %s310 = scalar_select %p309, %s28, 3
      %p311 = scmp.lt.s32.totalorder %s30, 0
      %s312 = scalar_select %p311, %s30, 0
      %s313 = sadd.s32 %s312, %s310
      %s314 = smul.addr %s308, 4
      %s315 = sadd.s32 %s313, %s314
      %s316 = smul.addr %s315, 4
      %s317 = scalar_lea.vmem %s3, %s316
      %p318 = scmp.lt.s32.totalorder %s27, 1
      %s319 = scalar_select %p318, %s27, 1
      %p320 = scmp.lt.s32.totalorder %s28, 3
      %s321 = scalar_select %p320, %s28, 3
      %p322 = scmp.lt.s32.totalorder %s29, 0
      %s323 = scalar_select %p322, %s29, 0
      %s324 = sadd.s32 %s323, %s321
      %s325 = smul.addr %s319, 4
      %s326 = sadd.s32 %s324, %s325
      %s327 = smul.addr %s326, 4
      %s328 = scalar_lea.vmem %s4, %s327
      %p330 = scmp.eq.s32.totalorder %s30, 0
      // Predicated region
      $region33: #{alibi_transformer_forward.13} parent=31 // pred_check
        %p331 = pneg %p330
      $region34: #{alibi_transformer_forward.13} parent=31 // pred_check_branch
        %333 = sbr.rel (%p331) target = $region36
      $region35: #{alibi_transformer_forward.13} parent=31 // pred_region
        %vm334 = vcmask 7168
        %335 = vst.msk [vmem:[#allocation2] sm:$0xff] %vm334, -inf
        %336 = vst.msk [vmem:[#allocation3] sm:$0xff] %vm334, 0.0
        %vm337 = vcmask 130048
        %338 = vst.msk [vmem:[#allocation4] sm:$0xff] %vm337, 0.0
      $region36: #{alibi_transformer_forward.13} parent=31 // pred_fallthru
        _
      %s339 = smul.u32 %s30, 8
      %s340 = smul.u32 %s29, 8
      %s341 = sadd.s32 %s340, 7
      %p342 = scmp.le.s32.totalorder %s339, %s341
      // Predicated region
      $region37: #{alibi_transformer_forward.13} parent=31 // pred_check
        %p343 = pneg %p342
      $region38: #{alibi_transformer_forward.13} parent=31 // pred_check_branch
        %345 = sbr.rel (%p343) target = $region40
      $region39: #{alibi_transformer_forward.13} parent=31 // pred_region
        %v346 = vld [vmem:[%s294] sm:$0xf]
        %v347 = vld [vmem:[%s306] sm:$0xf]
        %v348 = vld [vmem:[%s306 + $0x4] sm:$0xf]
        %v351 = vunpack.c.l.b16 %v347
        %v352 = vunpack.c.l.b16 %v348
        %v353 = vpack.c.b16 %v352, %v351
        %vm355 = vcmask 130048
        %v357 = vsel %vm355, %v346, 0
        %359 = vmatprep.subr.bf16.mxu0 0
        %360 = vmatpush1.bf16.msra.mxu0 0
        %361 = vmatprep.subr.bf16.mxu0 0
        %362 = vmatpush1.bf16.msra.mxu0 0
        %363 = vmatprep.subr.bf16.mxu0 0
        %364 = vmatpush1.bf16.msra.mxu0 0
        %365 = vmatprep.subr.bf16.mxu0 0
        %366 = vmatpush1.bf16.msra.mxu0 0
        %367 = vmatprep.subr.bf16.mxu0 0
        %368 = vmatpush1.bf16.msra.mxu0 0
        %369 = vmatprep.subr.bf16.mxu0 0
        %370 = vmatpush1.bf16.msra.mxu0 0
        %371 = vmatprep.subr.bf16.mxu0 0
        %372 = vmatpush1.bf16.msra.mxu0 0
        %373 = vmatprep.subr.bf16.mxu0 0
        %374 = vmatpush1.bf16.msra.mxu0 %v353
        %375 = vmatprep.subr.bf16.mxu0 0
        %376 = vmatpush2.bf16.msra.mxu0 0
        %377 = vmatprep.subr.bf16.mxu0 0
        %378 = vmatpush2.bf16.msra.mxu0 0
        %379 = vmatprep.subr.bf16.mxu0 0
        %380 = vmatpush2.bf16.msra.mxu0 0
        %381 = vmatprep.subr.bf16.mxu0 0
        %382 = vmatpush2.bf16.msra.mxu0 0
        %383 = vmatprep.subr.bf16.mxu0 0
        %384 = vmatpush2.bf16.msra.mxu0 0
        %385 = vmatprep.subr.bf16.mxu0 0
        %386 = vmatpush2.bf16.msra.mxu0 0
        %387 = vmatprep.subr.bf16.mxu0 0
        %388 = vmatpush2.bf16.msra.mxu0 0
        %389 = vmatprep.subr.bf16.mxu0 0
        %390 = vmatpush2.bf16.msra.mxu0 0
        %391 = vmatprep.mubr.bf16.mxu0 0
        %392 = vmatmul.mubr.bf16.gmra.mxu0 %v357
        %v393 = vpop.f32.mrf.mxu0
        %v394 = vadd.f32 0.0, %v393
        %v395 = vpop.f32.mrf.mxu0
        %v396 = vpop.f32.mrf.mxu0
        %v397 = vpop.f32.mrf.mxu0
        %398 = vdwg.mxu0
        %v399 = vmul.f32 %v394, 0.25
        %v400 = vlaneseq
        %v401 = vshrl.u32 %v400, 7
        %v402 = vstv %s340
        %v403 = vadd.s32 %v402, %v401
        %v404 = vlaneseq
        %v405 = vand.u32 %v404, 127
        %v406 = vstv %s339
        %v407 = vadd.s32 %v406, %v405
        %s408 = sld [smem:[#allocation6 + %s28]]
        %v409 = vcvt.s32.f32 %v407
        %v410 = vstv %s408
        %v411 = vmul.f32 %v410, %v409
        %v412 = vadd.f32 %v399, %v411
        %vm413 = vcmp.le.s32.totalorder %v407, %v403
        %v414 = vsel %vm413, %v412, -inf
        %v415 = vld [vmem:[#allocation2] sm:$0xff]
        %vm416 = vcmask 64512
        %v417 = vsel %vm416, %v414, -inf
        %418 = vmax.xlane.f32.xlu0 %v417
        %v419 = vpop.xlane.xlu0 %418
        %v420 = vmax.f32 %v415, %v419
        %v421 = vsub.f32 %v415, %v420
        %v422 = vmul.f32 %v421, 1.442695
        %v423 = vpow.pop %v422
        %425 = vset.pattern.permute.xlu0 0
        %426 = vperm.xlu0 %425, %v420
        %v427 = vpop.permute.xlu0 %426
        %v429 = vsub.f32 %v414, %v427
        %v430 = vmul.f32 %v429, 1.442695
        %v431 = vpow.pop %v430
        %v432 = vld [vmem:[#allocation3] sm:$0xff]
        %v433 = vmul.f32 %v423, %v432
        %v434 = vsel %vm416, %v431, 0.0
        %435 = vadd.xlane.f32.xlu0 %v434
        %v436 = vpop.xlane.xlu0 %435
        %v437 = vadd.f32 %v433, %v436
        %vm438 = vcmask 7168
        %439 = vst.msk [vmem:[#allocation3] sm:$0xff] %vm438, %v437
        %v440 = vld [vmem:[#allocation4] sm:$0xff]
        %442 = vset.pattern.permute.xlu0 0
        %443 = vperm.xlu0 %442, %v423
        %v444 = vpop.permute.xlu0 %443
        %v446 = vmul.f32 %v444, %v440
        %v447 = vpack.c.bf16 %v431, %v431
        %v448 = vld [vmem:[%s317] sm:$0xf]
        %v450 = vsel %vm416, %v447, 0
        %vm452 = vcmask 1043456
        %v454 = vsel %vm452, %v448, 0
        %456 = vmatprep.subr.bf16.mxu0 0
        %457 = vmatpush1.bf16.msra.mxu0 0
        %458 = vmatprep.subr.bf16.mxu0 0
        %459 = vmatpush1.bf16.msra.mxu0 0
        %460 = vmatprep.subr.bf16.mxu0 0
        %461 = vmatpush1.bf16.msra.mxu0 0
        %462 = vmatprep.subr.bf16.mxu0 0
        %463 = vmatpush1.bf16.msra.mxu0 0
        %464 = vmatprep.subr.bf16.mxu0 0
        %465 = vmatpush1.bf16.msra.mxu0 0
        %466 = vmatprep.subr.bf16.mxu0 0
        %467 = vmatpush1.bf16.msra.mxu0 0
        %468 = vmatprep.subr.bf16.mxu0 0
        %469 = vmatpush1.bf16.msra.mxu0 0
        %470 = vmatprep.subr.bf16.mxu0 0
        %471 = vmatpush1.bf16.msra.mxu0 %v454
        %472 = vmatprep.subr.bf16.mxu0 0
        %473 = vmatpush2.bf16.msra.mxu0 0
        %474 = vmatprep.subr.bf16.mxu0 0
        %475 = vmatpush2.bf16.msra.mxu0 0
        %476 = vmatprep.subr.bf16.mxu0 0
        %477 = vmatpush2.bf16.msra.mxu0 0
        %478 = vmatprep.subr.bf16.mxu0 0
        %479 = vmatpush2.bf16.msra.mxu0 0
        %480 = vmatprep.subr.bf16.mxu0 0
        %481 = vmatpush2.bf16.msra.mxu0 0
        %482 = vmatprep.subr.bf16.mxu0 0
        %483 = vmatpush2.bf16.msra.mxu0 0
        %484 = vmatprep.subr.bf16.mxu0 0
        %485 = vmatpush2.bf16.msra.mxu0 0
        %486 = vmatprep.subr.bf16.mxu0 0
        %487 = vmatpush2.bf16.msra.mxu0 0
        %488 = vmatprep.mubr.bf16.mxu0 0
        %489 = vmatmul.mubr.bf16.gmra.mxu0 %v450
        %v490 = vpop.f32.mrf.mxu0
        %v491 = vadd.f32 0.0, %v490
        %v492 = vpop.f32.mrf.mxu0
        %v493 = vpop.f32.mrf.mxu0
        %v494 = vpop.f32.mrf.mxu0
        %495 = vdwg.mxu0
        %v496 = vadd.f32 %v446, %v491
        %497 = vst.msk [vmem:[#allocation4] sm:$0xff] %vm355, %v496
        %498 = vst.msk [vmem:[#allocation2] sm:$0xff] %vm438, %v420
      $region40: #{alibi_transformer_forward.13} parent=31 // pred_fallthru
        _
      // Predicated region
      $region41: #{alibi_transformer_forward.13} parent=31 // pred_check
        %p499 = pneg %p330
      $region42: #{alibi_transformer_forward.13} parent=31 // pred_check_branch
        %501 = sbr.rel (%p499) target = $region44
      $region43: #{alibi_transformer_forward.13} parent=31 // pred_region
        %v502 = vld [vmem:[#allocation3] sm:$0xff]
        %v503 = vrcp.pop %v502
        %v504 = vld [vmem:[#allocation4] sm:$0xff]
        %506 = vset.pattern.permute.xlu0 0
        %507 = vperm.xlu0 %506, %v503
        %v508 = vpop.permute.xlu0 %507
        %v510 = vmul.f32 %v504, %v508
        %v511 = vpack.c.bf16 %v510, %v510
        %vm512 = vcmask 125952
        %513 = vst.msk [vmem:[%s328] sm:$0xf] %vm512, %v511
      $region44: #{alibi_transformer_forward.13} parent=31 // pred_fallthru
        _
      %p514 = scmp.lt.s32.totalorder %s27, 1
      %s515 = scalar_select %p514, %s27, 1
      %p516 = scmp.lt.s32.totalorder %s28, 3
      %s517 = scalar_select %p516, %s28, 3
      %p518 = scmp.lt.s32.totalorder %s29, 0
      %s519 = scalar_select %p518, %s29, 0
      %s520 = sadd.s32 %s519, %s517
      %s521 = smul.addr %s515, 4
      %s522 = sadd.s32 %s520, %s521
      %s523 = smul.addr %s522, 4
      %s524 = scalar_lea.vmem %s4, %s523
      // Predicated region
      $region45: #{alibi_transformer_forward.13} parent=31 // pred_check
        %p525 = pneg %p159
      $region46: #{alibi_transformer_forward.13} parent=31 // pred_check_branch
        %527 = sbr.rel (%p525) target = $region48
      $region47: #{alibi_transformer_forward.13} parent=31 // pred_region
        _
      $region48: #{alibi_transformer_forward.13} parent=31 // pred_fallthru
        _
    $region32: #{alibi_transformer_forward.13} parent=5 // pred_fallthru
      _
    %p528 = scmp.le.s32.totalorder 2, %s16
    // Predicated region
    $region49: #{alibi_transformer_forward.13} parent=5 // pred_check
      %p529 = pneg %p528
    $region50: #{alibi_transformer_forward.13} parent=5 // pred_check_branch
      %531 = sbr.rel (%p529) target = $region52
    $region51: #{alibi_transformer_forward.13} parent=5 // pred_region
      %s532 = ssub.s32 %s16, 2
      // Predicated region
      $region53: #{alibi_transformer_forward.13} parent=51 // pred_check
        %p533 = pneg %p165
      $region54: #{alibi_transformer_forward.13} parent=51 // pred_check_branch
        %535 = sbr.rel (%p533) target = $region56
      $region55: #{alibi_transformer_forward.13} parent=51 // pred_region
        %p536 = scmp.lt.s32.totalorder %s31, 1
        %s537 = scalar_select %p536, %s31, 1
        %p538 = scmp.lt.s32.totalorder %s32, 3
        %s539 = scalar_select %p538, %s32, 3
        %p540 = scmp.lt.s32.totalorder %s33, 0
        %s541 = scalar_select %p540, %s33, 0
        %s542 = sadd.s32 %s541, %s539
        %s543 = smul.addr %s537, 4
        %s544 = sadd.s32 %s542, %s543
        %s545 = smul.addr %s544, 4
        %s546 = scalar_lea.vmem %s4, %s545
      $region56: #{alibi_transformer_forward.13} parent=51 // pred_fallthru
        _
    $region52: #{alibi_transformer_forward.13} parent=5 // pred_fallthru
      _
  $region6: #{alibi_transformer_forward.13} parent=0 // loop_footer
    %s20 = sadd.s32 1, %s16
  $region7: #{alibi_transformer_forward.13} parent=0 // loop_footer_branch
    %15 = sbr.rel target = $region3
  $region8: #{alibi_transformer_forward.13} parent=0 // loop_exit
    _

// kernel: alibi_transformer_forward.15
$region0: #{alibi_transformer_forward.15}
  #allocation0 [shape = 'u32[]', space=smem, size = 0x4, offset = 0x4, fixed_abs, tag = 'smem constant byte address 0x4 - core index']
  #allocation1 [shape = 'u32[144,128]{1,0:T(1,128)}', space=vmem, size = 0x12000, scoped, tag = 'internal scratch']
  #allocation2 [shape = 'f32[16,128]{1,0:T(8,128)}', space=vmem, size = 0x2000, scoped, tag = 'scratch operand']
  %s0 = inlined_call_operand.vmem [shape: bf16[16,64], index: 0, kind: input, shape index: {}]
  %s1 = inlined_call_operand.vmem [shape: bf16[64,128], index: 1, kind: input, shape index: {}]
  %s2 = inlined_call_operand.vmem [shape: f32[1,128], index: 2, kind: input, shape index: {}]
  %s3 = inlined_call_operand.vmem [shape: bf16[16,128], index: 3, kind: output, shape index: {}]
  %s4 = sld [smem:[#allocation0]]
  $region30: #{alibi_transformer_forward.15} parent=0
    _
  %s6 = ssub.s32 1, %s4
  %s7 = scalar_select 0, %s6, %s4
  // Predicated region
  $region2: #{alibi_transformer_forward.15} parent=0 // pred_check
    _
  $region3: #{alibi_transformer_forward.15} parent=0 // pred_check_branch
    %9 = sbr.rel (0) target = $region5
  $region4: #{alibi_transformer_forward.15} parent=0 // pred_region
    _
  $region5: #{alibi_transformer_forward.15} parent=0 // pred_fallthru
    _
  // Predicated region
  $region6: #{alibi_transformer_forward.15} parent=0 // pred_check
    _
  $region7: #{alibi_transformer_forward.15} parent=0 // pred_check_branch
    %11 = sbr.rel (0) target = $region9
  $region8: #{alibi_transformer_forward.15} parent=0 // pred_region
    _
  $region9: #{alibi_transformer_forward.15} parent=0 // pred_fallthru
    _
  // Predicated region
  $region10: #{alibi_transformer_forward.15} parent=0 // pred_check
    _
  $region11: #{alibi_transformer_forward.15} parent=0 // pred_check_branch
    %13 = sbr.rel (0) target = $region13
  $region12: #{alibi_transformer_forward.15} parent=0 // pred_region
    _
  $region13: #{alibi_transformer_forward.15} parent=0 // pred_fallthru
    _
  %p15 = scmp.eq.s32.totalorder 0, 0
  // Predicated region
  $region14: #{alibi_transformer_forward.15} parent=0 // pred_check
    %p16 = pneg %p15
  $region15: #{alibi_transformer_forward.15} parent=0 // pred_check_branch
    %18 = sbr.rel (%p16) target = $region17
  $region16: #{alibi_transformer_forward.15} parent=0 // pred_region
    %19 = vst [vmem:[#allocation2] sm:$0xff] 0.0
    %20 = vst [vmem:[#allocation2 + $0x8] sm:$0xff] 0.0
  $region17: #{alibi_transformer_forward.15} parent=0 // pred_fallthru
    _
  %v21 = vld [vmem:[#allocation2] sm:$0xff]
  %v22 = vld [vmem:[#allocation2 + $0x8] sm:$0xff]
  %v23 = vld [vmem:[%s0] sm:$0xf]
  %v24 = vld [vmem:[%s0 + $0x4] sm:$0xf]
  %v25 = vld [vmem:[%s1] sm:$0xf]
  %v26 = vld [vmem:[%s1 + $0x4] sm:$0xf]
  %v27 = vld [vmem:[%s1 + $0x8] sm:$0xf]
  %v28 = vld [vmem:[%s1 + $0xc] sm:$0xf]
  %v29 = vld [vmem:[%s1 + $0x10] sm:$0xf]
  %v30 = vld [vmem:[%s1 + $0x14] sm:$0xf]
  %v31 = vld [vmem:[%s1 + $0x18] sm:$0xf]
  %v32 = vld [vmem:[%s1 + $0x1c] sm:$0xf]
  %v35 = vunpack.c.l.b16 %v23
  %v36 = vunpack.c.l.b16 %v24
  %v37 = vpack.c.b16 %v36, %v35
  %v46 = vunpack.c.l.b16 %v25
  %v47 = vunpack.c.l.b16 %v26
  %v48 = vunpack.c.l.b16 %v27
  %v49 = vunpack.c.l.b16 %v28
  %v50 = vunpack.c.l.b16 %v29
  %v51 = vunpack.c.l.b16 %v30
  %v52 = vunpack.c.l.b16 %v31
  %v53 = vunpack.c.l.b16 %v32
  %v54 = vpack.c.b16 %v47, %v46
  %v55 = vpack.c.b16 %v49, %v48
  %v56 = vpack.c.b16 %v51, %v50
  %v57 = vpack.c.b16 %v53, %v52
  %vm62 = vcmask 523264
  %v64 = vsel %vm62, %v37, 0
  %66 = vmatprep.subr.bf16.mxu0 0
  %67 = vmatpush1.bf16.msra.mxu0 0
  %68 = vmatprep.subr.bf16.mxu0 0
  %69 = vmatpush1.bf16.msra.mxu0 0
  %70 = vmatprep.subr.bf16.mxu0 0
  %71 = vmatpush1.bf16.msra.mxu0 0
  %72 = vmatprep.subr.bf16.mxu0 0
  %73 = vmatpush1.bf16.msra.mxu0 0
  %74 = vmatprep.subr.bf16.mxu0 0
  %75 = vmatpush1.bf16.msra.mxu0 %v57
  %76 = vmatprep.subr.bf16.mxu0 0
  %77 = vmatpush1.bf16.msra.mxu0 %v56
  %78 = vmatprep.subr.bf16.mxu0 0
  %79 = vmatpush1.bf16.msra.mxu0 %v55
  %80 = vmatprep.subr.bf16.mxu0 0
  %81 = vmatpush1.bf16.msra.mxu0 %v54
  %82 = vmatprep.subr.bf16.mxu0 0
  %83 = vmatpush2.bf16.msra.mxu0 0
  %84 = vmatprep.subr.bf16.mxu0 0
  %85 = vmatpush2.bf16.msra.mxu0 0
  %86 = vmatprep.subr.bf16.mxu0 0
  %87 = vmatpush2.bf16.msra.mxu0 0
  %88 = vmatprep.subr.bf16.mxu0 0
  %89 = vmatpush2.bf16.msra.mxu0 0
  %90 = vmatprep.subr.bf16.mxu0 0
  %91 = vmatpush2.bf16.msra.mxu0 0
  %92 = vmatprep.subr.bf16.mxu0 0
  %93 = vmatpush2.bf16.msra.mxu0 0
  %94 = vmatprep.subr.bf16.mxu0 0
  %95 = vmatpush2.bf16.msra.mxu0 0
  %96 = vmatprep.subr.bf16.mxu0 0
  %97 = vmatpush2.bf16.msra.mxu0 0
  %98 = vmatprep.mubr.bf16.mxu0 0
  %99 = vmatmul.mubr.bf16.gmra.mxu0 %v64
  %v100 = vpop.f32.mrf.mxu0
  %v101 = vadd.f32 0.0, %v100
  %v102 = vpop.f32.mrf.mxu0
  %v103 = vpop.f32.mrf.mxu0
  %v104 = vadd.f32 0.0, %v103
  %v105 = vpop.f32.mrf.mxu0
  %106 = vdwg.mxu0
  %v107 = vadd.f32 %v21, %v101
  %v108 = vadd.f32 %v22, %v104
  %109 = vst [vmem:[#allocation2] sm:$0xff] %v107
  %110 = vst [vmem:[#allocation2 + $0x8] sm:$0xff] %v108
  // Predicated region
  $region18: #{alibi_transformer_forward.15} parent=0 // pred_check
    %p111 = pneg %p15
  $region19: #{alibi_transformer_forward.15} parent=0 // pred_check_branch
    %113 = sbr.rel (%p111) target = $region21
  $region20: #{alibi_transformer_forward.15} parent=0 // pred_region
    %v114 = vld [vmem:[#allocation2] sm:$0xff]
    %v115 = vld [vmem:[#allocation2 + $0x8] sm:$0xff]
    %v116 = vld [vmem:[%s2] sm:$0x1]
    %v118 = vlaneseq
    %v119 = vshrl.u32 %v118, 7
    %v120 = vsub.s32 0, %v119
    %v121 = vrot.slane %v116, %v120
    %v123 = vadd.f32 %v114, %v121
    %v124 = vadd.f32 %v115, %v121
    %v125 = vmul.f32 %v123, 0.5
    %v126 = vmul.f32 %v124, 0.5
    %v127 = vmul.f32 %v123, 0.044715
    %v128 = vmul.f32 %v124, 0.044715
    %v129 = vmul.f32 %v127, %v123
    %v130 = vmul.f32 %v128, %v124
    %v131 = vmul.f32 %v129, %v123
    %v132 = vmul.f32 %v130, %v124
    %v133 = vadd.f32 %v123, %v131
    %v134 = vadd.f32 %v124, %v132
    %v135 = vmul.f32 %v133, 0.7978846
    %v136 = vmul.f32 %v134, 0.7978846
    %v137 = vtanh.pop %v135
    %v138 = vtanh.pop %v136
    %v139 = vadd.f32 %v137, 1.0
    %v140 = vadd.f32 %v138, 1.0
    %v141 = vmul.f32 %v125, %v139
    %v142 = vmul.f32 %v126, %v140
    %v143 = vpack.c.bf16 %v142, %v141
    %v145 = vunpack.c.l.b16 %v143
    %v146 = vunpack.c.h.b16 %v143
    %v147 = vpack.c.b16 %v145, %v145
    %v148 = vpack.c.b16 %v146, %v146
    %151 = vst [vmem:[%s3] sm:$0xf] %v147
    %152 = vst [vmem:[%s3 + $0x4] sm:$0xf] %v148
  $region21: #{alibi_transformer_forward.15} parent=0 // pred_fallthru
    _
  // Predicated region
  $region22: #{alibi_transformer_forward.15} parent=0 // pred_check
    _
  $region23: #{alibi_transformer_forward.15} parent=0 // pred_check_branch
    %154 = sbr.rel (0) target = $region25
  $region24: #{alibi_transformer_forward.15} parent=0 // pred_region
    _
  $region25: #{alibi_transformer_forward.15} parent=0 // pred_fallthru
    _
  // Predicated region
  $region26: #{alibi_transformer_forward.15} parent=0 // pred_check
    _
  $region27: #{alibi_transformer_forward.15} parent=0 // pred_check_branch
    %156 = sbr.rel (0) target = $region29
  $region28: #{alibi_transformer_forward.15} parent=0 // pred_region
    _
  $region29: #{alibi_transformer_forward.15} parent=0 // pred_fallthru
    _

// kernel: alibi_transformer_forward.14
$region0: #{alibi_transformer_forward.14}
  #allocation0 [shape = 'u32[]', space=smem, size = 0x4, offset = 0x4, fixed_abs, tag = 'smem constant byte address 0x4 - core index']
  #allocation1 [shape = 'u32[144,128]{1,0:T(1,128)}', space=vmem, size = 0x12000, scoped, tag = 'internal scratch']
  #allocation2 [shape = 'f32[16,64]{1,0:T(8,128)}', space=vmem, size = 0x2000, scoped, tag = 'scratch operand']
  %s0 = inlined_call_operand.vmem [shape: bf16[16,64], index: 0, kind: input, shape index: {}]
  %s1 = inlined_call_operand.vmem [shape: bf16[64,64], index: 1, kind: input, shape index: {}]
  %s2 = inlined_call_operand.vmem [shape: f32[1,64], index: 2, kind: input, shape index: {}]
  %s3 = inlined_call_operand.vmem [shape: bf16[16,64], index: 3, kind: input, shape index: {}]
  %s4 = inlined_call_operand.vmem [shape: f32[1,64], index: 4, kind: input, shape index: {}]
  %s5 = inlined_call_operand.vmem [shape: f32[1,64], index: 5, kind: input, shape index: {}]
  %s6 = inlined_call_operand.vmem [shape: bf16[16,64], index: 6, kind: output, shape index: {}]
  %s7 = sld [smem:[#allocation0]]
  $region42: #{alibi_transformer_forward.14} parent=0
    _
  %s9 = ssub.s32 1, %s7
  %s10 = scalar_select 0, %s9, %s7
  // Predicated region
  $region2: #{alibi_transformer_forward.14} parent=0 // pred_check
    _
  $region3: #{alibi_transformer_forward.14} parent=0 // pred_check_branch
    %12 = sbr.rel (0) target = $region5
  $region4: #{alibi_transformer_forward.14} parent=0 // pred_region
    _
  $region5: #{alibi_transformer_forward.14} parent=0 // pred_fallthru
    _
  // Predicated region
  $region6: #{alibi_transformer_forward.14} parent=0 // pred_check
    _
  $region7: #{alibi_transformer_forward.14} parent=0 // pred_check_branch
    %14 = sbr.rel (0) target = $region9
  $region8: #{alibi_transformer_forward.14} parent=0 // pred_region
    _
  $region9: #{alibi_transformer_forward.14} parent=0 // pred_fallthru
    _
  // Predicated region
  $region10: #{alibi_transformer_forward.14} parent=0 // pred_check
    _
  $region11: #{alibi_transformer_forward.14} parent=0 // pred_check_branch
    %16 = sbr.rel (0) target = $region13
  $region12: #{alibi_transformer_forward.14} parent=0 // pred_region
    _
  $region13: #{alibi_transformer_forward.14} parent=0 // pred_fallthru
    _
  // Predicated region
  $region14: #{alibi_transformer_forward.14} parent=0 // pred_check
    _
  $region15: #{alibi_transformer_forward.14} parent=0 // pred_check_branch
    %18 = sbr.rel (0) target = $region17
  $region16: #{alibi_transformer_forward.14} parent=0 // pred_region
    _
  $region17: #{alibi_transformer_forward.14} parent=0 // pred_fallthru
    _
  // Predicated region
  $region18: #{alibi_transformer_forward.14} parent=0 // pred_check
    _
  $region19: #{alibi_transformer_forward.14} parent=0 // pred_check_branch
    %20 = sbr.rel (0) target = $region21
  $region20: #{alibi_transformer_forward.14} parent=0 // pred_region
    _
  $region21: #{alibi_transformer_forward.14} parent=0 // pred_fallthru
    _
  // Predicated region
  $region22: #{alibi_transformer_forward.14} parent=0 // pred_check
    _
  $region23: #{alibi_transformer_forward.14} parent=0 // pred_check_branch
    %22 = sbr.rel (0) target = $region25
  $region24: #{alibi_transformer_forward.14} parent=0 // pred_region
    _
  $region25: #{alibi_transformer_forward.14} parent=0 // pred_fallthru
    _
  %p24 = scmp.eq.s32.totalorder 0, 0
  // Predicated region
  $region26: #{alibi_transformer_forward.14} parent=0 // pred_check
    %p25 = pneg %p24
  $region27: #{alibi_transformer_forward.14} parent=0 // pred_check_branch
    %27 = sbr.rel (%p25) target = $region29
  $region28: #{alibi_transformer_forward.14} parent=0 // pred_region
    %vm28 = vcmask 523264
    %29 = vst.msk [vmem:[#allocation2] sm:$0xff] %vm28, 0.0
    %30 = vst.msk [vmem:[#allocation2 + $0x8] sm:$0xff] %vm28, 0.0
  $region29: #{alibi_transformer_forward.14} parent=0 // pred_fallthru
    _
  %v31 = vld [vmem:[#allocation2] sm:$0xff]
  %v32 = vld [vmem:[#allocation2 + $0x8] sm:$0xff]
  %v33 = vld [vmem:[%s0] sm:$0xf]
  %v34 = vld [vmem:[%s0 + $0x4] sm:$0xf]
  %v35 = vld [vmem:[%s1] sm:$0xf]
  %v36 = vld [vmem:[%s1 + $0x4] sm:$0xf]
  %v37 = vld [vmem:[%s1 + $0x8] sm:$0xf]
  %v38 = vld [vmem:[%s1 + $0xc] sm:$0xf]
  %v39 = vld [vmem:[%s1 + $0x10] sm:$0xf]
  %v40 = vld [vmem:[%s1 + $0x14] sm:$0xf]
  %v41 = vld [vmem:[%s1 + $0x18] sm:$0xf]
  %v42 = vld [vmem:[%s1 + $0x1c] sm:$0xf]
  %v45 = vunpack.c.l.b16 %v33
  %v46 = vunpack.c.l.b16 %v34
  %v47 = vpack.c.b16 %v46, %v45
  %v56 = vunpack.c.l.b16 %v35
  %v57 = vunpack.c.l.b16 %v36
  %v58 = vunpack.c.l.b16 %v37
  %v59 = vunpack.c.l.b16 %v38
  %v60 = vunpack.c.l.b16 %v39
  %v61 = vunpack.c.l.b16 %v40
  %v62 = vunpack.c.l.b16 %v41
  %v63 = vunpack.c.l.b16 %v42
  %v64 = vpack.c.b16 %v57, %v56
  %v65 = vpack.c.b16 %v59, %v58
  %v66 = vpack.c.b16 %v61, %v60
  %v67 = vpack.c.b16 %v63, %v62
  %vm72 = vcmask 523264
  %v74 = vsel %vm72, %v47, 0
  %76 = vmatprep.subr.bf16.mxu0 0
  %77 = vmatpush1.bf16.msra.mxu0 0
  %78 = vmatprep.subr.bf16.mxu0 0
  %79 = vmatpush1.bf16.msra.mxu0 0
  %80 = vmatprep.subr.bf16.mxu0 0
  %81 = vmatpush1.bf16.msra.mxu0 0
  %82 = vmatprep.subr.bf16.mxu0 0
  %83 = vmatpush1.bf16.msra.mxu0 0
  %84 = vmatprep.subr.bf16.mxu0 0
  %85 = vmatpush1.bf16.msra.mxu0 %v67
  %86 = vmatprep.subr.bf16.mxu0 0
  %87 = vmatpush1.bf16.msra.mxu0 %v66
  %88 = vmatprep.subr.bf16.mxu0 0
  %89 = vmatpush1.bf16.msra.mxu0 %v65
  %90 = vmatprep.subr.bf16.mxu0 0
  %91 = vmatpush1.bf16.msra.mxu0 %v64
  %92 = vmatprep.subr.bf16.mxu0 0
  %93 = vmatpush2.bf16.msra.mxu0 0
  %94 = vmatprep.subr.bf16.mxu0 0
  %95 = vmatpush2.bf16.msra.mxu0 0
  %96 = vmatprep.subr.bf16.mxu0 0
  %97 = vmatpush2.bf16.msra.mxu0 0
  %98 = vmatprep.subr.bf16.mxu0 0
  %99 = vmatpush2.bf16.msra.mxu0 0
  %100 = vmatprep.subr.bf16.mxu0 0
  %101 = vmatpush2.bf16.msra.mxu0 0
  %102 = vmatprep.subr.bf16.mxu0 0
  %103 = vmatpush2.bf16.msra.mxu0 0
  %104 = vmatprep.subr.bf16.mxu0 0
  %105 = vmatpush2.bf16.msra.mxu0 0
  %106 = vmatprep.subr.bf16.mxu0 0
  %107 = vmatpush2.bf16.msra.mxu0 0
  %108 = vmatprep.mubr.bf16.mxu0 0
  %109 = vmatmul.mubr.bf16.gmra.mxu0 %v74
  %v110 = vpop.f32.mrf.mxu0
  %v111 = vadd.f32 0.0, %v110
  %v112 = vpop.f32.mrf.mxu0
  %v113 = vpop.f32.mrf.mxu0
  %v114 = vadd.f32 0.0, %v113
  %v115 = vpop.f32.mrf.mxu0
  %116 = vdwg.mxu0
  %v117 = vadd.f32 %v31, %v111
  %v118 = vadd.f32 %v32, %v114
  %119 = vst.msk [vmem:[#allocation2] sm:$0xff] %vm72, %v117
  %120 = vst.msk [vmem:[#allocation2 + $0x8] sm:$0xff] %vm72, %v118
  // Predicated region
  $region30: #{alibi_transformer_forward.14} parent=0 // pred_check
    %p121 = pneg %p24
  $region31: #{alibi_transformer_forward.14} parent=0 // pred_check_branch
    %123 = sbr.rel (%p121) target = $region33
  $region32: #{alibi_transformer_forward.14} parent=0 // pred_region
    %v124 = vld [vmem:[#allocation2] sm:$0xff]
    %v125 = vld [vmem:[#allocation2 + $0x8] sm:$0xff]
    %v126 = vld [vmem:[%s2] sm:$0x1]
    %v128 = vlaneseq
    %v129 = vshrl.u32 %v128, 7
    %v130 = vsub.s32 0, %v129
    %v131 = vrot.slane %v126, %v130
    %v133 = vadd.f32 %v124, %v131
    %v134 = vadd.f32 %v125, %v131
    %v135 = vld [vmem:[%s3] sm:$0xf]
    %v136 = vld [vmem:[%s3 + $0x4] sm:$0xf]
    %v137 = vunpack.c.l.bf16 %v135
    %v138 = vunpack.c.l.bf16 %v136
    %v139 = vadd.f32 %v133, %v137
    %v140 = vadd.f32 %v134, %v138
    %v141 = vsel %vm72, %v139, 0.0
    %142 = vadd.xlane.f32.xlu0 %v141
    %v143 = vpop.xlane.xlu0 %142
    %v144 = vsel %vm72, %v140, 0.0
    %145 = vadd.xlane.f32.xlu0 %v144
    %v146 = vpop.xlane.xlu0 %145
    %v147 = vrcp.pop 64.0
    %v148 = vmul.f32 %v143, %v147
    %v149 = vmul.f32 %v146, %v147
    %v150 = vsub.f32 %v139, %v148
    %v151 = vsub.f32 %v140, %v149
    %v152 = vmul.f32 %v150, %v150
    %v153 = vmul.f32 %v151, %v151
    %v154 = vsel %vm72, %v152, 0.0
    %155 = vadd.xlane.f32.xlu0 %v154
    %v156 = vpop.xlane.xlu0 %155
    %v157 = vsel %vm72, %v153, 0.0
    %158 = vadd.xlane.f32.xlu0 %v157
    %v159 = vpop.xlane.xlu0 %158
    %v160 = vmul.f32 %v156, %v147
    %v161 = vmul.f32 %v159, %v147
    %v162 = vadd.f32 %v160, 1e-05
    %v163 = vadd.f32 %v161, 1e-05
    %v164 = vrsqrt.pop %v162
    %v165 = vrsqrt.pop %v163
    %v166 = vmul.f32 %v150, %v164
    %v167 = vmul.f32 %v151, %v165
    %v168 = vld [vmem:[%s4] sm:$0x1]
    %v170 = vlaneseq
    %v171 = vshrl.u32 %v170, 7
    %v172 = vsub.s32 0, %v171
    %v173 = vrot.slane %v168, %v172
    %v175 = vmul.f32 %v166, %v173
    %v176 = vmul.f32 %v167, %v173
    %v177 = vld [vmem:[%s5] sm:$0x1]
    %v179 = vlaneseq
    %v180 = vshrl.u32 %v179, 7
    %v181 = vsub.s32 0, %v180
    %v182 = vrot.slane %v177, %v181
    %v184 = vadd.f32 %v175, %v182
    %v185 = vadd.f32 %v176, %v182
    %v186 = vpack.c.bf16 %v185, %v184
    %v188 = vunpack.c.l.b16 %v186
    %v189 = vunpack.c.h.b16 %v186
    %v190 = vpack.c.b16 %v188, %v188
    %v191 = vpack.c.b16 %v189, %v189
    %vm194 = vcmask 519168
    %195 = vst.msk [vmem:[%s6] sm:$0xf] %vm194, %v190
    %196 = vst.msk [vmem:[%s6 + $0x4] sm:$0xf] %vm194, %v191
  $region33: #{alibi_transformer_forward.14} parent=0 // pred_fallthru
    _
  // Predicated region
  $region34: #{alibi_transformer_forward.14} parent=0 // pred_check
    _
  $region35: #{alibi_transformer_forward.14} parent=0 // pred_check_branch
    %198 = sbr.rel (0) target = $region37
  $region36: #{alibi_transformer_forward.14} parent=0 // pred_region
    _
  $region37: #{alibi_transformer_forward.14} parent=0 // pred_fallthru
    _
  // Predicated region
  $region38: #{alibi_transformer_forward.14} parent=0 // pred_check
    _
  $region39: #{alibi_transformer_forward.14} parent=0 // pred_check_branch
    %200 = sbr.rel (0) target = $region41
  $region40: #{alibi_transformer_forward.14} parent=0 // pred_region
    _
  $region41: #{alibi_transformer_forward.14} parent=0 // pred_fallthru
    _

// kernel: alibi_transformer_forward.16
$region0: #{alibi_transformer_forward.16}
  #allocation0 [shape = 'u32[]', space=smem, size = 0x4, offset = 0x4, fixed_abs, tag = 'smem constant byte address 0x4 - core index']
  #allocation1 [shape = 'u32[144,128]{1,0:T(1,128)}', space=vmem, size = 0x12000, scoped, tag = 'internal scratch']
  #allocation2 [shape = 'f32[16,64]{1,0:T(8,128)}', space=vmem, size = 0x2000, scoped, tag = 'scratch operand']
  %s0 = inlined_call_operand.vmem [shape: bf16[16,128], index: 0, kind: input, shape index: {}]
  %s1 = inlined_call_operand.vmem [shape: bf16[128,64], index: 1, kind: input, shape index: {}]
  %s2 = inlined_call_operand.vmem [shape: f32[1,64], index: 2, kind: input, shape index: {}]
  %s3 = inlined_call_operand.vmem [shape: bf16[16,64], index: 3, kind: input, shape index: {}]
  %s4 = inlined_call_operand.vmem [shape: f32[1,64], index: 4, kind: input, shape index: {}]
  %s5 = inlined_call_operand.vmem [shape: f32[1,64], index: 5, kind: input, shape index: {}]
  %s6 = inlined_call_operand.vmem [shape: bf16[16,64], index: 6, kind: output, shape index: {}]
  %s7 = sld [smem:[#allocation0]]
  $region42: #{alibi_transformer_forward.16} parent=0
    _
  %s9 = ssub.s32 1, %s7
  %s10 = scalar_select 0, %s9, %s7
  // Predicated region
  $region2: #{alibi_transformer_forward.16} parent=0 // pred_check
    _
  $region3: #{alibi_transformer_forward.16} parent=0 // pred_check_branch
    %12 = sbr.rel (0) target = $region5
  $region4: #{alibi_transformer_forward.16} parent=0 // pred_region
    _
  $region5: #{alibi_transformer_forward.16} parent=0 // pred_fallthru
    _
  // Predicated region
  $region6: #{alibi_transformer_forward.16} parent=0 // pred_check
    _
  $region7: #{alibi_transformer_forward.16} parent=0 // pred_check_branch
    %14 = sbr.rel (0) target = $region9
  $region8: #{alibi_transformer_forward.16} parent=0 // pred_region
    _
  $region9: #{alibi_transformer_forward.16} parent=0 // pred_fallthru
    _
  // Predicated region
  $region10: #{alibi_transformer_forward.16} parent=0 // pred_check
    _
  $region11: #{alibi_transformer_forward.16} parent=0 // pred_check_branch
    %16 = sbr.rel (0) target = $region13
  $region12: #{alibi_transformer_forward.16} parent=0 // pred_region
    _
  $region13: #{alibi_transformer_forward.16} parent=0 // pred_fallthru
    _
  // Predicated region
  $region14: #{alibi_transformer_forward.16} parent=0 // pred_check
    _
  $region15: #{alibi_transformer_forward.16} parent=0 // pred_check_branch
    %18 = sbr.rel (0) target = $region17
  $region16: #{alibi_transformer_forward.16} parent=0 // pred_region
    _
  $region17: #{alibi_transformer_forward.16} parent=0 // pred_fallthru
    _
  // Predicated region
  $region18: #{alibi_transformer_forward.16} parent=0 // pred_check
    _
  $region19: #{alibi_transformer_forward.16} parent=0 // pred_check_branch
    %20 = sbr.rel (0) target = $region21
  $region20: #{alibi_transformer_forward.16} parent=0 // pred_region
    _
  $region21: #{alibi_transformer_forward.16} parent=0 // pred_fallthru
    _
  // Predicated region
  $region22: #{alibi_transformer_forward.16} parent=0 // pred_check
    _
  $region23: #{alibi_transformer_forward.16} parent=0 // pred_check_branch
    %22 = sbr.rel (0) target = $region25
  $region24: #{alibi_transformer_forward.16} parent=0 // pred_region
    _
  $region25: #{alibi_transformer_forward.16} parent=0 // pred_fallthru
    _
  %p24 = scmp.eq.s32.totalorder 0, 0
  // Predicated region
  $region26: #{alibi_transformer_forward.16} parent=0 // pred_check
    %p25 = pneg %p24
  $region27: #{alibi_transformer_forward.16} parent=0 // pred_check_branch
    %27 = sbr.rel (%p25) target = $region29
  $region28: #{alibi_transformer_forward.16} parent=0 // pred_region
    %vm28 = vcmask 523264
    %29 = vst.msk [vmem:[#allocation2] sm:$0xff] %vm28, 0.0
    %30 = vst.msk [vmem:[#allocation2 + $0x8] sm:$0xff] %vm28, 0.0
  $region29: #{alibi_transformer_forward.16} parent=0 // pred_fallthru
    _
  %v31 = vld [vmem:[#allocation2] sm:$0xff]
  %v32 = vld [vmem:[#allocation2 + $0x8] sm:$0xff]
  %v33 = vld [vmem:[%s0] sm:$0xf]
  %v34 = vld [vmem:[%s0 + $0x4] sm:$0xf]
  %v35 = vld [vmem:[%s1] sm:$0xf]
  %v36 = vld [vmem:[%s1 + $0x4] sm:$0xf]
  %v37 = vld [vmem:[%s1 + $0x8] sm:$0xf]
  %v38 = vld [vmem:[%s1 + $0xc] sm:$0xf]
  %v39 = vld [vmem:[%s1 + $0x10] sm:$0xf]
  %v40 = vld [vmem:[%s1 + $0x14] sm:$0xf]
  %v41 = vld [vmem:[%s1 + $0x18] sm:$0xf]
  %v42 = vld [vmem:[%s1 + $0x1c] sm:$0xf]
  %v43 = vld [vmem:[%s1 + $0x20] sm:$0xf]
  %v44 = vld [vmem:[%s1 + $0x24] sm:$0xf]
  %v45 = vld [vmem:[%s1 + $0x28] sm:$0xf]
  %v46 = vld [vmem:[%s1 + $0x2c] sm:$0xf]
  %v47 = vld [vmem:[%s1 + $0x30] sm:$0xf]
  %v48 = vld [vmem:[%s1 + $0x34] sm:$0xf]
  %v49 = vld [vmem:[%s1 + $0x38] sm:$0xf]
  %v50 = vld [vmem:[%s1 + $0x3c] sm:$0xf]
  %v53 = vunpack.c.l.b16 %v33
  %v54 = vunpack.c.l.b16 %v34
  %v55 = vpack.c.b16 %v54, %v53
  %v73 = vunpack.c.l.b16 %v35
  %v74 = vunpack.c.l.b16 %v36
  %v75 = vunpack.c.l.b16 %v37
  %v76 = vunpack.c.l.b16 %v38
  %v77 = vunpack.c.l.b16 %v39
  %v78 = vunpack.c.l.b16 %v40
  %v79 = vunpack.c.l.b16 %v41
  %v80 = vunpack.c.l.b16 %v42
  %v81 = vunpack.c.l.b16 %v43
  %v82 = vunpack.c.l.b16 %v44
  %v83 = vunpack.c.l.b16 %v45
  %v84 = vunpack.c.l.b16 %v46
  %v85 = vunpack.c.l.b16 %v47
  %v86 = vunpack.c.l.b16 %v48
  %v87 = vunpack.c.l.b16 %v49
  %v88 = vunpack.c.l.b16 %v50
  %v89 = vpack.c.b16 %v74, %v73
  %v90 = vpack.c.b16 %v76, %v75
  %v91 = vpack.c.b16 %v78, %v77
  %v92 = vpack.c.b16 %v80, %v79
  %v93 = vpack.c.b16 %v82, %v81
  %v94 = vpack.c.b16 %v84, %v83
  %v95 = vpack.c.b16 %v86, %v85
  %v96 = vpack.c.b16 %v88, %v87
  %105 = vmatprep.subr.bf16.mxu0 0
  %106 = vmatpush1.bf16.msra.mxu0 %v96
  %107 = vmatprep.subr.bf16.mxu0 0
  %108 = vmatpush1.bf16.msra.mxu0 %v95
  %109 = vmatprep.subr.bf16.mxu0 0
  %110 = vmatpush1.bf16.msra.mxu0 %v94
  %111 = vmatprep.subr.bf16.mxu0 0
  %112 = vmatpush1.bf16.msra.mxu0 %v93
  %113 = vmatprep.subr.bf16.mxu0 0
  %114 = vmatpush1.bf16.msra.mxu0 %v92
  %115 = vmatprep.subr.bf16.mxu0 0
  %116 = vmatpush1.bf16.msra.mxu0 %v91
  %117 = vmatprep.subr.bf16.mxu0 0
  %118 = vmatpush1.bf16.msra.mxu0 %v90
  %119 = vmatprep.subr.bf16.mxu0 0
  %120 = vmatpush1.bf16.msra.mxu0 %v89
  %121 = vmatprep.subr.bf16.mxu0 0
  %122 = vmatpush2.bf16.msra.mxu0 0
  %123 = vmatprep.subr.bf16.mxu0 0
  %124 = vmatpush2.bf16.msra.mxu0 0
  %125 = vmatprep.subr.bf16.mxu0 0
  %126 = vmatpush2.bf16.msra.mxu0 0
  %127 = vmatprep.subr.bf16.mxu0 0
  %128 = vmatpush2.bf16.msra.mxu0 0
  %129 = vmatprep.subr.bf16.mxu0 0
  %130 = vmatpush2.bf16.msra.mxu0 0
  %131 = vmatprep.subr.bf16.mxu0 0
  %132 = vmatpush2.bf16.msra.mxu0 0
  %133 = vmatprep.subr.bf16.mxu0 0
  %134 = vmatpush2.bf16.msra.mxu0 0
  %135 = vmatprep.subr.bf16.mxu0 0
  %136 = vmatpush2.bf16.msra.mxu0 0
  %137 = vmatprep.mubr.bf16.mxu0 0
  %138 = vmatmul.mubr.bf16.gmra.mxu0 %v55
  %v139 = vpop.f32.mrf.mxu0
  %v140 = vadd.f32 0.0, %v139
  %v141 = vpop.f32.mrf.mxu0
  %v142 = vpop.f32.mrf.mxu0
  %v143 = vadd.f32 0.0, %v142
  %v144 = vpop.f32.mrf.mxu0
  %145 = vdwg.mxu0
  %v146 = vadd.f32 %v31, %v140
  %v147 = vadd.f32 %v32, %v143
  %vm148 = vcmask 523264
  %149 = vst.msk [vmem:[#allocation2] sm:$0xff] %vm148, %v146
  %150 = vst.msk [vmem:[#allocation2 + $0x8] sm:$0xff] %vm148, %v147
  // Predicated region
  $region30: #{alibi_transformer_forward.16} parent=0 // pred_check
    %p151 = pneg %p24
  $region31: #{alibi_transformer_forward.16} parent=0 // pred_check_branch
    %153 = sbr.rel (%p151) target = $region33
  $region32: #{alibi_transformer_forward.16} parent=0 // pred_region
    %v154 = vld [vmem:[#allocation2] sm:$0xff]
    %v155 = vld [vmem:[#allocation2 + $0x8] sm:$0xff]
    %v156 = vld [vmem:[%s2] sm:$0x1]
    %v158 = vlaneseq
    %v159 = vshrl.u32 %v158, 7
    %v160 = vsub.s32 0, %v159
    %v161 = vrot.slane %v156, %v160
    %v163 = vadd.f32 %v154, %v161
    %v164 = vadd.f32 %v155, %v161
    %v165 = vld [vmem:[%s3] sm:$0xf]
    %v166 = vld [vmem:[%s3 + $0x4] sm:$0xf]
    %v167 = vunpack.c.l.bf16 %v165
    %v168 = vunpack.c.l.bf16 %v166
    %v169 = vadd.f32 %v163, %v167
    %v170 = vadd.f32 %v164, %v168
    %v171 = vsel %vm148, %v169, 0.0
    %172 = vadd.xlane.f32.xlu0 %v171
    %v173 = vpop.xlane.xlu0 %172
    %v174 = vsel %vm148, %v170, 0.0
    %175 = vadd.xlane.f32.xlu0 %v174
    %v176 = vpop.xlane.xlu0 %175
    %v177 = vrcp.pop 64.0
    %v178 = vmul.f32 %v173, %v177
    %v179 = vmul.f32 %v176, %v177
    %v180 = vsub.f32 %v169, %v178
    %v181 = vsub.f32 %v170, %v179
    %v182 = vmul.f32 %v180, %v180
    %v183 = vmul.f32 %v181, %v181
    %v184 = vsel %vm148, %v182, 0.0
    %185 = vadd.xlane.f32.xlu0 %v184
    %v186 = vpop.xlane.xlu0 %185
    %v187 = vsel %vm148, %v183, 0.0
    %188 = vadd.xlane.f32.xlu0 %v187
    %v189 = vpop.xlane.xlu0 %188
    %v190 = vmul.f32 %v186, %v177
    %v191 = vmul.f32 %v189, %v177
    %v192 = vadd.f32 %v190, 1e-05
    %v193 = vadd.f32 %v191, 1e-05
    %v194 = vrsqrt.pop %v192
    %v195 = vrsqrt.pop %v193
    %v196 = vmul.f32 %v180, %v194
    %v197 = vmul.f32 %v181, %v195
    %v198 = vld [vmem:[%s4] sm:$0x1]
    %v200 = vlaneseq
    %v201 = vshrl.u32 %v200, 7
    %v202 = vsub.s32 0, %v201
    %v203 = vrot.slane %v198, %v202
    %v205 = vmul.f32 %v196, %v203
    %v206 = vmul.f32 %v197, %v203
    %v207 = vld [vmem:[%s5] sm:$0x1]
    %v209 = vlaneseq
    %v210 = vshrl.u32 %v209, 7
    %v211 = vsub.s32 0, %v210
    %v212 = vrot.slane %v207, %v211
    %v214 = vadd.f32 %v205, %v212
    %v215 = vadd.f32 %v206, %v212
    %v216 = vpack.c.bf16 %v215, %v214
    %v218 = vunpack.c.l.b16 %v216
    %v219 = vunpack.c.h.b16 %v216
    %v220 = vpack.c.b16 %v218, %v218
    %v221 = vpack.c.b16 %v219, %v219
    %vm224 = vcmask 519168
    %225 = vst.msk [vmem:[%s6] sm:$0xf] %vm224, %v220
    %226 = vst.msk [vmem:[%s6 + $0x4] sm:$0xf] %vm224, %v221
  $region33: #{alibi_transformer_forward.16} parent=0 // pred_fallthru
    _
  // Predicated region
  $region34: #{alibi_transformer_forward.16} parent=0 // pred_check
    _
  $region35: #{alibi_transformer_forward.16} parent=0 // pred_check_branch
    %228 = sbr.rel (0) target = $region37
  $region36: #{alibi_transformer_forward.16} parent=0 // pred_region
    _
  $region37: #{alibi_transformer_forward.16} parent=0 // pred_fallthru
    _
  // Predicated region
  $region38: #{alibi_transformer_forward.16} parent=0 // pred_check
    _
  $region39: #{alibi_transformer_forward.16} parent=0 // pred_check_branch
    %230 = sbr.rel (0) target = $region41
  $region40: #{alibi_transformer_forward.16} parent=0 // pred_region
    _
  $region41: #{alibi_transformer_forward.16} parent=0 // pred_fallthru
    _

// kernel: alibi_transformer_forward.23
$region0: #{alibi_transformer_forward.23}
  #allocation0 [shape = 'u32[]', space=smem, size = 0x4, offset = 0x4, fixed_abs, tag = 'smem constant byte address 0x4 - core index']
  #allocation1 [shape = 'u32[144,128]{1,0:T(1,128)}', space=vmem, size = 0x12000, scoped, tag = 'internal scratch']
  #allocation2 [shape = 'f32[16,64]{1,0:T(8,128)}', space=vmem, size = 0x2000, scoped, tag = 'scratch operand']
  %s0 = inlined_call_operand.vmem [shape: bf16[16,64], index: 0, kind: input, shape index: {}]
  %s1 = inlined_call_operand.vmem [shape: bf16[64,64], index: 1, kind: input, shape index: {}]
  %s2 = inlined_call_operand.vmem [shape: f32[1,64], index: 2, kind: input, shape index: {}]
  %s3 = inlined_call_operand.hbm [shape: f32[16,64], index: 3, kind: output, shape index: {}]
  %s4 = sld [smem:[#allocation0]]
  $region30: #{alibi_transformer_forward.23} parent=0
    _
  %s6 = ssub.s32 1, %s4
  %s7 = scalar_select 0, %s6, %s4
  $region1: #{alibi_transformer_forward.23} parent=0
    #allocation3 [shape = 'u8[8192]{0}', space=vmem, size = 0x2000, scoped, tag = 'output window, operand 0, single buffered']
    #allocation4 [shape = 's32[1]{0}', space=sflag, size = 0x4, scoped, tag = 'scoped memory for alibi_transformer_forward.23']
    %8 = vsyncpa [#allocation4], 0
    // Predicated region
    $region2: #{alibi_transformer_forward.23} parent=1 // pred_check
      _
    $region3: #{alibi_transformer_forward.23} parent=1 // pred_check_branch
      %10 = sbr.rel (0) target = $region5
    $region4: #{alibi_transformer_forward.23} parent=1 // pred_region
      _
    $region5: #{alibi_transformer_forward.23} parent=1 // pred_fallthru
      _
    // Predicated region
    $region6: #{alibi_transformer_forward.23} parent=1 // pred_check
      _
    $region7: #{alibi_transformer_forward.23} parent=1 // pred_check_branch
      %12 = sbr.rel (0) target = $region9
    $region8: #{alibi_transformer_forward.23} parent=1 // pred_region
      _
    $region9: #{alibi_transformer_forward.23} parent=1 // pred_fallthru
      _
    // Predicated region
    $region10: #{alibi_transformer_forward.23} parent=1 // pred_check
      _
    $region11: #{alibi_transformer_forward.23} parent=1 // pred_check_branch
      %14 = sbr.rel (0) target = $region13
    $region12: #{alibi_transformer_forward.23} parent=1 // pred_region
      _
    $region13: #{alibi_transformer_forward.23} parent=1 // pred_fallthru
      _
    %p16 = scmp.eq.s32.totalorder 0, 0
    // Predicated region
    $region14: #{alibi_transformer_forward.23} parent=1 // pred_check
      %p17 = pneg %p16
    $region15: #{alibi_transformer_forward.23} parent=1 // pred_check_branch
      %19 = sbr.rel (%p17) target = $region17
    $region16: #{alibi_transformer_forward.23} parent=1 // pred_region
      %vm20 = vcmask 523264
      %21 = vst.msk [vmem:[#allocation2] sm:$0xff] %vm20, 0.0
      %22 = vst.msk [vmem:[#allocation2 + $0x8] sm:$0xff] %vm20, 0.0
    $region17: #{alibi_transformer_forward.23} parent=1 // pred_fallthru
      _
    %v23 = vld [vmem:[#allocation2] sm:$0xff]
    %v24 = vld [vmem:[#allocation2 + $0x8] sm:$0xff]
    %v25 = vld [vmem:[%s0] sm:$0xf]
    %v26 = vld [vmem:[%s0 + $0x4] sm:$0xf]
    %v27 = vld [vmem:[%s1] sm:$0xf]
    %v28 = vld [vmem:[%s1 + $0x4] sm:$0xf]
    %v29 = vld [vmem:[%s1 + $0x8] sm:$0xf]
    %v30 = vld [vmem:[%s1 + $0xc] sm:$0xf]
    %v31 = vld [vmem:[%s1 + $0x10] sm:$0xf]
    %v32 = vld [vmem:[%s1 + $0x14] sm:$0xf]
    %v33 = vld [vmem:[%s1 + $0x18] sm:$0xf]
    %v34 = vld [vmem:[%s1 + $0x1c] sm:$0xf]
    %v37 = vunpack.c.l.b16 %v25
    %v38 = vunpack.c.l.b16 %v26
    %v39 = vpack.c.b16 %v38, %v37
    %v48 = vunpack.c.l.b16 %v27
    %v49 = vunpack.c.l.b16 %v28
    %v50 = vunpack.c.l.b16 %v29
    %v51 = vunpack.c.l.b16 %v30
    %v52 = vunpack.c.l.b16 %v31
    %v53 = vunpack.c.l.b16 %v32
    %v54 = vunpack.c.l.b16 %v33
    %v55 = vunpack.c.l.b16 %v34
    %v56 = vpack.c.b16 %v49, %v48
    %v57 = vpack.c.b16 %v51, %v50
    %v58 = vpack.c.b16 %v53, %v52
    %v59 = vpack.c.b16 %v55, %v54
    %vm64 = vcmask 523264
    %v66 = vsel %vm64, %v39, 0
    %68 = vmatprep.subr.bf16.mxu0 0
    %69 = vmatpush1.bf16.msra.mxu0 0
    %70 = vmatprep.subr.bf16.mxu0 0
    %71 = vmatpush1.bf16.msra.mxu0 0
    %72 = vmatprep.subr.bf16.mxu0 0
    %73 = vmatpush1.bf16.msra.mxu0 0
    %74 = vmatprep.subr.bf16.mxu0 0
    %75 = vmatpush1.bf16.msra.mxu0 0
    %76 = vmatprep.subr.bf16.mxu0 0
    %77 = vmatpush1.bf16.msra.mxu0 %v59
    %78 = vmatprep.subr.bf16.mxu0 0
    %79 = vmatpush1.bf16.msra.mxu0 %v58
    %80 = vmatprep.subr.bf16.mxu0 0
    %81 = vmatpush1.bf16.msra.mxu0 %v57
    %82 = vmatprep.subr.bf16.mxu0 0
    %83 = vmatpush1.bf16.msra.mxu0 %v56
    %84 = vmatprep.subr.bf16.mxu0 0
    %85 = vmatpush2.bf16.msra.mxu0 0
    %86 = vmatprep.subr.bf16.mxu0 0
    %87 = vmatpush2.bf16.msra.mxu0 0
    %88 = vmatprep.subr.bf16.mxu0 0
    %89 = vmatpush2.bf16.msra.mxu0 0
    %90 = vmatprep.subr.bf16.mxu0 0
    %91 = vmatpush2.bf16.msra.mxu0 0
    %92 = vmatprep.subr.bf16.mxu0 0
    %93 = vmatpush2.bf16.msra.mxu0 0
    %94 = vmatprep.subr.bf16.mxu0 0
    %95 = vmatpush2.bf16.msra.mxu0 0
    %96 = vmatprep.subr.bf16.mxu0 0
    %97 = vmatpush2.bf16.msra.mxu0 0
    %98 = vmatprep.subr.bf16.mxu0 0
    %99 = vmatpush2.bf16.msra.mxu0 0
    %100 = vmatprep.mubr.bf16.mxu0 0
    %101 = vmatmul.mubr.bf16.gmra.mxu0 %v66
    %v102 = vpop.f32.mrf.mxu0
    %v103 = vadd.f32 0.0, %v102
    %v104 = vpop.f32.mrf.mxu0
    %v105 = vpop.f32.mrf.mxu0
    %v106 = vadd.f32 0.0, %v105
    %v107 = vpop.f32.mrf.mxu0
    %108 = vdwg.mxu0
    %v109 = vadd.f32 %v23, %v103
    %v110 = vadd.f32 %v24, %v106
    %111 = vst.msk [vmem:[#allocation2] sm:$0xff] %vm64, %v109
    %112 = vst.msk [vmem:[#allocation2 + $0x8] sm:$0xff] %vm64, %v110
    // Predicated region
    $region18: #{alibi_transformer_forward.23} parent=1 // pred_check
      %p113 = pneg %p16
    $region19: #{alibi_transformer_forward.23} parent=1 // pred_check_branch
      %115 = sbr.rel (%p113) target = $region21
    $region20: #{alibi_transformer_forward.23} parent=1 // pred_region
      %v116 = vld [vmem:[#allocation2] sm:$0xff]
      %v117 = vld [vmem:[#allocation2 + $0x8] sm:$0xff]
      %v118 = vld [vmem:[%s2] sm:$0x1]
      %v120 = vlaneseq
      %v121 = vshrl.u32 %v120, 7
      %v122 = vsub.s32 0, %v121
      %v123 = vrot.slane %v118, %v122
      %v125 = vadd.f32 %v116, %v123
      %v126 = vadd.f32 %v117, %v123
      %127 = vst.msk [vmem:[#allocation3] sm:$0xff] %vm64, %v125
      %128 = vst.msk [vmem:[#allocation3 + $0x8] sm:$0xff] %vm64, %v126
    $region21: #{alibi_transformer_forward.23} parent=1 // pred_fallthru
      _
    // Predicated region
    $region22: #{alibi_transformer_forward.23} parent=1 // pred_check
      _
    $region23: #{alibi_transformer_forward.23} parent=1 // pred_check_branch
      %130 = sbr.rel (0) target = $region25
    $region24: #{alibi_transformer_forward.23} parent=1 // pred_region
      %s132 = ssub.s32 256, 256
      %133 = vsyncadd [#allocation4], %s132
      %s134 = sshll.u32 [#allocation3], 4
      %s135 = int_to_ptr.vmem [resolvable:$true] %s134
      %140 = dma.vmem_to_hbm [thread:$0]  %s135, 256, %s3, [#allocation4], 128, 128, 8
    $region25: #{alibi_transformer_forward.23} parent=1 // pred_fallthru
      _
    // Predicated region
    $region26: #{alibi_transformer_forward.23} parent=1 // pred_check
      _
    $region27: #{alibi_transformer_forward.23} parent=1 // pred_check_branch
      %142 = sbr.rel (0) target = $region29
    $region28: #{alibi_transformer_forward.23} parent=1 // pred_region
      %143 = dma.done [#allocation4], 256
    $region29: #{alibi_transformer_forward.23} parent=1 // pred_fallthru
      _
    %144 = vsyncpa [#allocation4], 1

// kernel: alibi_transformer_forward.22
$region0: #{alibi_transformer_forward.22}
  #allocation0 [shape = 'u32[]', space=smem, size = 0x4, offset = 0x4, fixed_abs, tag = 'smem constant byte address 0x4 - core index']
  #allocation1 [shape = 'u32[144,128]{1,0:T(1,128)}', space=vmem, size = 0x12000, scoped, tag = 'internal scratch']
  %s0 = inlined_call_operand.vmem [shape: bf16[16,64], index: 0, kind: input, shape index: {}]
  %s1 = inlined_call_operand.vmem [shape: f32[1,64], index: 1, kind: input, shape index: {}]
  %s2 = inlined_call_operand.vmem [shape: f32[1,64], index: 2, kind: input, shape index: {}]
  %s3 = inlined_call_operand.vmem [shape: bf16[16,64], index: 3, kind: output, shape index: {}]
  %s4 = sld [smem:[#allocation0]]
  $region22: #{alibi_transformer_forward.22} parent=0
    _
  %s6 = ssub.s32 1, %s4
  %s7 = scalar_select 0, %s6, %s4
  // Predicated region
  $region2: #{alibi_transformer_forward.22} parent=0 // pred_check
    _
  $region3: #{alibi_transformer_forward.22} parent=0 // pred_check_branch
    %9 = sbr.rel (0) target = $region5
  $region4: #{alibi_transformer_forward.22} parent=0 // pred_region
    _
  $region5: #{alibi_transformer_forward.22} parent=0 // pred_fallthru
    _
  // Predicated region
  $region6: #{alibi_transformer_forward.22} parent=0 // pred_check
    _
  $region7: #{alibi_transformer_forward.22} parent=0 // pred_check_branch
    %11 = sbr.rel (0) target = $region9
  $region8: #{alibi_transformer_forward.22} parent=0 // pred_region
    _
  $region9: #{alibi_transformer_forward.22} parent=0 // pred_fallthru
    _
  // Predicated region
  $region10: #{alibi_transformer_forward.22} parent=0 // pred_check
    _
  $region11: #{alibi_transformer_forward.22} parent=0 // pred_check_branch
    %13 = sbr.rel (0) target = $region13
  $region12: #{alibi_transformer_forward.22} parent=0 // pred_region
    _
  $region13: #{alibi_transformer_forward.22} parent=0 // pred_fallthru
    _
  %v14 = vld [vmem:[%s0] sm:$0xf]
  %v15 = vld [vmem:[%s0 + $0x4] sm:$0xf]
  %v16 = vunpack.c.l.bf16 %v14
  %v17 = vunpack.c.l.bf16 %v15
  %vm18 = vcmask 523264
  %v19 = vsel %vm18, %v16, 0.0
  %20 = vadd.xlane.f32.xlu0 %v19
  %v21 = vpop.xlane.xlu0 %20
  %v22 = vsel %vm18, %v17, 0.0
  %23 = vadd.xlane.f32.xlu0 %v22
  %v24 = vpop.xlane.xlu0 %23
  %v25 = vrcp.pop 64.0
  %v26 = vmul.f32 %v21, %v25
  %v27 = vmul.f32 %v24, %v25
  %v28 = vsub.f32 %v16, %v26
  %v29 = vsub.f32 %v17, %v27
  %v30 = vmul.f32 %v28, %v28
  %v31 = vmul.f32 %v29, %v29
  %v32 = vsel %vm18, %v30, 0.0
  %33 = vadd.xlane.f32.xlu0 %v32
  %v34 = vpop.xlane.xlu0 %33
  %v35 = vsel %vm18, %v31, 0.0
  %36 = vadd.xlane.f32.xlu0 %v35
  %v37 = vpop.xlane.xlu0 %36
  %v38 = vmul.f32 %v34, %v25
  %v39 = vmul.f32 %v37, %v25
  %v40 = vadd.f32 %v38, 1e-05
  %v41 = vadd.f32 %v39, 1e-05
  %v42 = vrsqrt.pop %v40
  %v43 = vrsqrt.pop %v41
  %v44 = vmul.f32 %v28, %v42
  %v45 = vmul.f32 %v29, %v43
  %v46 = vld [vmem:[%s1] sm:$0x1]
  %v48 = vlaneseq
  %v49 = vshrl.u32 %v48, 7
  %v50 = vsub.s32 0, %v49
  %v51 = vrot.slane %v46, %v50
  %v53 = vmul.f32 %v44, %v51
  %v54 = vmul.f32 %v45, %v51
  %v55 = vld [vmem:[%s2] sm:$0x1]
  %v57 = vlaneseq
  %v58 = vshrl.u32 %v57, 7
  %v59 = vsub.s32 0, %v58
  %v60 = vrot.slane %v55, %v59
  %v62 = vadd.f32 %v53, %v60
  %v63 = vadd.f32 %v54, %v60
  %v64 = vpack.c.bf16 %v63, %v62
  %v66 = vunpack.c.l.b16 %v64
  %v67 = vunpack.c.h.b16 %v64
  %v68 = vpack.c.b16 %v66, %v66
  %v69 = vpack.c.b16 %v67, %v67
  %vm72 = vcmask 519168
  %73 = vst.msk [vmem:[%s3] sm:$0xf] %vm72, %v68
  %74 = vst.msk [vmem:[%s3 + $0x4] sm:$0xf] %vm72, %v69
  // Predicated region
  $region14: #{alibi_transformer_forward.22} parent=0 // pred_check
    _
  $region15: #{alibi_transformer_forward.22} parent=0 // pred_check_branch
    %76 = sbr.rel (0) target = $region17
  $region16: #{alibi_transformer_forward.22} parent=0 // pred_region
    _
  $region17: #{alibi_transformer_forward.22} parent=0 // pred_fallthru
    _
  // Predicated region
  $region18: #{alibi_transformer_forward.22} parent=0 // pred_check
    _
  $region19: #{alibi_transformer_forward.22} parent=0 // pred_check_branch
    %78 = sbr.rel (0) target = $region21
  $region20: #{alibi_transformer_forward.22} parent=0 // pred_region
    _
  $region21: #{alibi_transformer_forward.22} parent=0 // pred_fallthru
    _

</llo_original>
